<compile_context>
chip_gen: v5e
topology: v5e:2x2
jax: 0.10.0
libtpu: 0.0.40
codegen_flags: <defaults>
</compile_context>

<pallas_src>
import functools
import math

import numpy as np
import jax
import jax.numpy as jnp
from jax.experimental import pallas as pl
from jax.experimental.pallas import tpu as pltpu

BN_EPS = 1e-5
LRELU_SLOPE = 0.01


def _round_up(x, m):
    return ((x + m - 1) // m) * m


def _deconv_stats_kernel(xr_ref, w_ref, y_ref, sum_ref, sumsq_ref,
                         acc_s_ref, acc_q_ref, *, K, TR, Wo_pad, KC):
    """Pass 1: transposed conv (as one deep direct-conv GEMM per tile) + BN partial stats.

    xr_ref    : (Hp_pad, Wo_pad, KC)     width-im2col'd padded image (bf16), resident per image
                                         lane index = kw*Cin_p + ci, KC = K*Cin_p (mult of 128)
    w_ref     : (K*KC, Cout_p)           flipped direct-conv weight (bf16), resident
    y_ref     : (TR*Wo_pad, Cout_p)      pre-BN activations for this tile (bf16, lane-dense)
    sum_ref   : (1, Cout_p) f32          per-channel sum for this image (written on last tile)
    sumsq_ref : (1, Cout_p) f32          per-channel sum of squares for this image
    acc_*_ref : (1, Cout_p) f32          VMEM accumulators, persist across the row-tile axis
    """
    r = pl.program_id(1)

    @pl.when(r == 0)
    def _init():
        acc_s_ref[...] = jnp.zeros_like(acc_s_ref)
        acc_q_ref[...] = jnp.zeros_like(acc_q_ref)

    row0 = pl.multiple_of(r * TR, TR)
    M = TR * Wo_pad

    # Tiny per-tile im2col in VMEM: K row-shifted slabs, each already lane-dense over
    # (kw, ci).  The (TR, Wo_pad, KC) -> (M, KC) reshape is layout-preserving because
    # Wo_pad % 8 == 0 and KC % 128 == 0, and the lane concat is at 128-aligned offsets.
    parts = []
    for kh in range(K):
        slab = xr_ref[pl.ds(row0 + kh, TR), :, :]        # (TR, Wo_pad, KC) bf16
        parts.append(slab.reshape(M, KC))
    lhs = jnp.concatenate(parts, axis=-1)                # (M, K*KC) bf16, fully lane-dense

    # Single deep-contraction GEMM on the MXU, f32 accumulation.
    y = jnp.dot(lhs, w_ref[...], preferred_element_type=jnp.float32)   # (M, Cout_p) f32

    # Store the pre-BN intermediate in bf16 (halves HBM traffic of both passes).
    y_ref[...] = y.astype(y_ref.dtype)

    # BN partial statistics from the f32 result (before the bf16 cast).  Zero-padded tail
    # rows/columns/channels contribute exactly zero (no bias added), so no masking is needed;
    # the true element count is applied outside the kernel.
    acc_s_ref[...] += jnp.sum(y, axis=0, keepdims=True)
    acc_q_ref[...] += jnp.sum(y * y, axis=0, keepdims=True)

    @pl.when(r == pl.num_programs(1) - 1)
    def _flush():
        sum_ref[...] = acc_s_ref[...]
        sumsq_ref[...] = acc_q_ref[...]


def _bn_lrelu_kernel(y_ref, s_ref, t_ref, o_ref):
    """Pass 2: folded BatchNorm (y*s + t) followed by LeakyReLU(0.01)."""
    z = y_ref[...].astype(jnp.float32) * s_ref[...] + t_ref[...]
    o_ref[...] = jnp.where(z >= 0, z, LRELU_SLOPE * z)


def deconv_block4_forward(x_nchw, w_t, bias, gamma, beta,
                          kernel_size=4, stride=1, padding=0):
    """Forward of DeconvBlock4.  `w_t` is the ConvTranspose2d weight (Cin, Cout, K, K).

    `bias` is accepted for API parity but unused: a per-channel constant bias is exactly
    cancelled by the training-mode BatchNorm mean subtraction.
    """
    # TODO(synk): stride > 1 would require input dilation before the shifted-window GEMM;
    # the module default is stride=1.
    assert stride == 1, "only stride=1 (module default) implemented"

    N, Cin, H, W = x_nchw.shape
    K = kernel_size
    Cout = w_t.shape[1]
    Ho = (H - 1) * stride - 2 * padding + K
    Wo = (W - 1) * stride - 2 * padding + K
    pad = K - 1 - padding
    assert pad >= 0

    # Pad Cin so that each per-kh slab (K*Cin_p lanes) is lane-tile aligned -> the in-kernel
    # lane concat is trivially cheap and the single GEMM contraction is a multiple of 128
    # (>= 256 whenever Cin >= 64, filling the v6e/v7x MXU depth).
    align = 128 // math.gcd(K, 128)                      # K=4 -> 32
    Cin_p = _round_up(Cin, max(8, align))
    Cout_p = _round_up(Cout, 128)                        # lane-dense stores / full MXU width
    KC = K * Cin_p                                       # per-kh slab lane width (mult of 128)
    KKC = K * KC                                         # full GEMM contraction depth

    Wo_pad = _round_up(Wo, 8)

    # Row-tile selection: big blocks (>= ~2048 output pixels) to amortize per-step overhead,
    # capped so a single tile's VMEM working set stays <= ~8 MiB (fits all generations,
    # including v7x's 64 MiB/TC, under the default 32 MiB scoped-VMEM limit).
    target_pixels = 2048
    TR = _round_up(Ho, 8)
    while TR > 8 and (TR - 8) * Wo_pad >= target_pixels:
        TR -= 8

    def _tile_bytes(tr):
        m = tr * Wo_pad
        # lhs (bf16) + f32 GEMM result + double-buffered bf16 output block
        return m * (KKC * 2 + Cout_p * 4 + Cout_p * 2 * 2)

    while TR > 8 and _tile_bytes(TR) > 8 * 1024 * 1024:
        TR -= 8

    Ho_pad = _round_up(Ho, TR)
    R = Ho_pad // TR                                     # row tiles per image
    Hp_pad = Ho_pad + K - 1                              # padded-input rows for the last tile
    Wp = W + 2 * pad                                     # == Wo + K - 1
    M_true = N * Ho * Wo                                 # true element count for BN stats

    # --- wrapper-side layout glue ------------------------------------------------------------
    # NCHW -> NHWC, spatial zero-pad (top/left = pad, bottom/right so everything tiles evenly),
    # channel pad Cin -> Cin_p.  Then a width-only im2col (factor-K duplication of the *small*
    # input) so the kernel's per-kh slabs are lane-dense: xrow[n,h,c, kw*Cin_p+ci] = xp[n,h,c+kw,ci].
    x_nhwc = jnp.transpose(x_nchw, (0, 2, 3, 1)).astype(jnp.float32)
    xp = jnp.pad(x_nhwc, ((0, 0), (pad, Hp_pad - H - pad), (pad, pad), (0, Cin_p - Cin)))
    xrow = jnp.stack([xp[:, :, kw:kw + Wo, :] for kw in range(K)], axis=3)
    xrow = xrow.reshape(N, Hp_pad, Wo, KC)
    xrow = jnp.pad(xrow, ((0, 0), (0, 0), (0, Wo_pad - Wo), (0, 0))).astype(jnp.bfloat16)

    # Equivalent direct-conv weight: w_c[kh, kw, ci, co] = w_t[ci, co, K-1-kh, K-1-kw],
    # zero-padded to (K, K, Cin_p, Cout_p) and flattened to (K*K*Cin_p, Cout_p) in the same
    # (kh, kw, ci) order used for the LHS lanes.
    w_c = jnp.transpose(w_t[:, :, ::-1, ::-1].astype(jnp.float32), (2, 3, 0, 1))
    w_c = jnp.pad(w_c, ((0, 0), (0, 0), (0, Cin_p - Cin), (0, Cout_p - Cout)))
    w_c = w_c.reshape(KKC, Cout_p).astype(jnp.bfloat16)

    grid = (N, R)

    # --- pass 1: conv (single deep GEMM per tile) + per-channel sum / sum-of-squares ---------
    # TODO(synk): on v7x with N < 2 per chip, a second parallel axis with partial-stat streams
    # would use both TensorCores; not implemented here.
    y_flat, sum_nc, sumsq_nc = pl.pallas_call(
        functools.partial(_deconv_stats_kernel, K=K, TR=TR, Wo_pad=Wo_pad, KC=KC),
        out_shape=(
            jax.ShapeDtypeStruct((N, Ho_pad * Wo_pad, Cout_p), jnp.bfloat16),
            jax.ShapeDtypeStruct((N, 1, Cout_p), jnp.float32),
            jax.ShapeDtypeStruct((N, 1, Cout_p), jnp.float32),
        ),
        grid_spec=pltpu.PrefetchScalarGridSpec(
            num_scalar_prefetch=0,
            grid=grid,
            in_specs=[
                # Whole width-im2col'd image resident across the row-tile axis (one DMA per n).
                pl.BlockSpec((None, Hp_pad, Wo_pad, KC), lambda n, r: (n, 0, 0, 0)),
                # Weight resident for the whole grid.
                pl.BlockSpec((KKC, Cout_p), lambda n, r: (0, 0)),
            ],
            out_specs=[
                pl.BlockSpec((None, TR * Wo_pad, Cout_p), lambda n, r: (n, r, 0)),
                pl.BlockSpec((None, 1, Cout_p), lambda n, r: (n, 0, 0)),
                pl.BlockSpec((None, 1, Cout_p), lambda n, r: (n, 0, 0)),
            ],
            scratch_shapes=[pltpu.VMEM((1, Cout_p), jnp.float32),
                            pltpu.VMEM((1, Cout_p), jnp.float32)],
        ),
        compiler_params=pltpu.CompilerParams(
            dimension_semantics=("parallel", "arbitrary"),   # batch parallel, row tiles sequential
            vmem_limit_bytes=32 * 1024 * 1024,
        ),
        cost_estimate=pl.CostEstimate(
            flops=2 * N * Ho_pad * Wo_pad * KKC * Cout_p,
            transcendentals=0,
            bytes_accessed=(int(xrow.size) * 2 + int(w_c.size) * 2
                            + N * Ho_pad * Wo_pad * Cout_p * 2 + 2 * N * Cout_p * 4),
        ),
    )(xrow, w_c)

    # --- glue: fold BN batch stats + affine into a single per-channel scale/shift ------------
    # Note: E[y^2]-E[y]^2 with f32 sums is adequate at these sizes; for very large batches a
    # Welford-style merge would be preferable.
    mean = jnp.sum(sum_nc, axis=0) / M_true                              # (1, Cout_p)
    e2 = jnp.sum(sumsq_nc, axis=0) / M_true
    var = jnp.maximum(e2 - mean * mean, 0.0)                             # biased variance
    gamma_p = jnp.pad(gamma.astype(jnp.float32), (0, Cout_p - Cout)).reshape(1, Cout_p)
    beta_p = jnp.pad(beta.astype(jnp.float32), (0, Cout_p - Cout)).reshape(1, Cout_p)
    s = gamma_p * jax.lax.rsqrt(var + BN_EPS)
    t = beta_p - mean * s

    # --- pass 2: normalize + LeakyReLU over a flat lane-dense (rows, Cout_p) layout ----------
    total_rows = N * Ho_pad * Wo_pad
    TB2 = TR * Wo_pad                                    # large lane-dense blocks
    y2 = y_flat.reshape(total_rows, Cout_p)              # free reshape (contiguous)

    out_flat = pl.pallas_call(
        _bn_lrelu_kernel,
        out_shape=jax.ShapeDtypeStruct((total_rows, Cout_p), jnp.float32),
        grid_spec=pltpu.PrefetchScalarGridSpec(
            num_scalar_prefetch=0,
            grid=(total_rows // TB2,),
            in_specs=[
                pl.BlockSpec((TB2, Cout_p), lambda i: (i, 0)),
                pl.BlockSpec((1, Cout_p), lambda i: (0, 0)),
                pl.BlockSpec((1, Cout_p), lambda i: (0, 0)),
            ],
            out_specs=pl.BlockSpec((TB2, Cout_p), lambda i: (i, 0)),
        ),
        compiler_params=pltpu.CompilerParams(
            dimension_semantics=("parallel",),
            vmem_limit_bytes=32 * 1024 * 1024,
        ),
    )(y2, s, t)

    # Crop spatial/channel padding BEFORE the transpose back to NCHW (avoids moving the
    # 16x-padded channel dim through the epilogue).
    out = out_flat.reshape(N, Ho_pad, Wo_pad, Cout_p)[:, :Ho, :Wo, :Cout]
    return jnp.transpose(out, (0, 3, 1, 2))


def _reference_forward(x, w, b, gamma, beta, K=4):
    """Independent numpy reference (naive scatter-add transposed conv + BN + LeakyReLU)."""
    x = np.asarray(x, np.float32)
    w = np.asarray(w, np.float32)
    N, Cin, H, W = x.shape
    Cout = w.shape[1]
    Ho, Wo = H + K - 1, W + K - 1
    y = np.zeros((N, Cout, Ho, Wo), np.float32)
    for n in range(N):
        for ci in range(Cin):
            for i in range(H):
                for j in range(W):
                    y[n, :, i:i + K, j:j + K] += x[n, ci, i, j] * w[ci]
    y += np.asarray(b, np.float32)[None, :, None, None]
    mean = y.mean(axis=(0, 2, 3), keepdims=True)
    var = y.var(axis=(0, 2, 3), keepdims=True)  # biased, as PyTorch BN uses for normalization
    yh = (y - mean) / np.sqrt(var + BN_EPS)
    yh = yh * np.asarray(gamma, np.float32)[None, :, None, None] \
        + np.asarray(beta, np.float32)[None, :, None, None]
    return np.where(yh >= 0, yh, LRELU_SLOPE * yh)


if __name__ == "__main__":
    # Small shapes consistent with the module's forward (NCHW input).
    N, Cin, H, W = 2, 4, 16, 16
    Cout, K = 8, 4

    key = jax.random.PRNGKey(0)
    kx, kw, kb = jax.random.split(key, 3)

    # Round inputs to bf16-representable values so the kernel's bf16 MXU inputs are lossless;
    # the remaining error vs the f32 numpy reference comes from the bf16 pre-BN intermediate
    # (<= ~4e-3 relative) and summation order.
    x = jax.random.normal(kx, (N, Cin, H, W), dtype=jnp.float32)
    x = x.astype(jnp.bfloat16).astype(jnp.float32)

    # ConvTranspose2d weight (Cin, Cout, K, K), xavier_uniform with leaky_relu gain.
    gain = math.sqrt(2.0 / (1.0 + 0.01 ** 2))              # nn.init.calculate_gain('leaky_relu')
    fan_in = Cout * K * K                                   # PyTorch fan calc on (Cin, Cout, K, K)
    fan_out = Cin * K * K
    bound_w = gain * math.sqrt(6.0 / (fan_in + fan_out))
    w_t = jax.random.uniform(kw, (Cin, Cout, K, K), jnp.float32, -bound_w, bound_w)
    w_t = w_t.astype(jnp.bfloat16).astype(jnp.float32)

    # ConvTranspose2d default bias init (reference adds it; the kernel drops it -- BN cancels it).
    bound_b = 1.0 / math.sqrt(fan_in)
    bias = jax.random.uniform(kb, (Cout,), jnp.float32, -bound_b, bound_b)

    # BatchNorm2d default affine init
    gamma = jnp.ones((Cout,), jnp.float32)
    beta = jnp.zeros((Cout,), jnp.float32)

    out = deconv_block4_forward(x, w_t, bias, gamma, beta, kernel_size=K, stride=1, padding=0)
    out = jax.block_until_ready(out)

    ref = _reference_forward(x, w_t, bias, gamma, beta, K=K)
    assert out.shape == (N, Cout, H + K - 1, W + K - 1), out.shape
    # Tolerance accounts for the bf16 pre-BN intermediate (documented design choice).
    np.testing.assert_allclose(np.asarray(out), ref, rtol=1e-2, atol=1e-2)

    print("KERNEL_OK")
</pallas_src>

<mosaic_0001>
module attributes {stable_mosaic.version = 11 : i64} {
  func.func @_deconv_stats_kernel(%arg0: i32, %arg1: i32, %arg2: memref<1x27x24x128xbf16, #tpu.memory_space<vmem>>, %arg3: memref<512x128xbf16, #tpu.memory_space<vmem>>, %arg4: memref<1x576x128xbf16, #tpu.memory_space<vmem>>, %arg5: memref<1x1x128xf32, #tpu.memory_space<vmem>>, %arg6: memref<1x1x128xf32, #tpu.memory_space<vmem>>, %arg7: memref<1x128xf32, #tpu.memory_space<vmem>>, %arg8: memref<1x128xf32, #tpu.memory_space<vmem>>) attributes {dimension_semantics = [#tpu.dimension_semantics<parallel>, #tpu.dimension_semantics<arbitrary>], iteration_bounds = array<i64: 2, 1>, scalar_prefetch = 0 : i64, scratch_operands = 2 : i64, tpu.core_type = #tpu.core_type<tc>, window_params = [{transform_indices = @transform_0, window_bounds = array<i64: 1, 27, 24, 128>}, {pipeline_mode = #tpu.pipeline_mode<synchronous>, transform_indices = @transform_1, window_bounds = array<i64: 512, 128>}, {transform_indices = @transform_2, window_bounds = array<i64: 1, 576, 128>}, {transform_indices = @transform_3, window_bounds = array<i64: 1, 1, 128>}, {transform_indices = @transform_4, window_bounds = array<i64: 1, 1, 128>}]} {
    %c0_i32 = arith.constant 0 : i32
    %0 = arith.cmpi eq, %arg1, %c0_i32 : i32
    %1 = arith.extui %0 : i1 to i32
    %c0_i32_0 = arith.constant 0 : i32
    %2 = arith.cmpi ne, %1, %c0_i32_0 : i32
    scf.if %2 {
      %cst_30 = arith.constant 0.000000e+00 : f32
      %46 = vector.broadcast %cst_30 : f32 to vector<1x128xf32>
      %c0_31 = arith.constant 0 : index
      %c0_32 = arith.constant 0 : index
      %47 = vector.load %arg7[%c0_31, %c0_32] : memref<1x128xf32, #tpu.memory_space<vmem>>, vector<1x128xf32>
      tpu.vector_store %arg7[%c0_31, %c0_32], %46 {strides = array<i32>} : memref<1x128xf32, #tpu.memory_space<vmem>>, vector<1x128xf32>,
      %cst_33 = arith.constant 0.000000e+00 : f32
      %48 = vector.broadcast %cst_33 : f32 to vector<1x128xf32>
      %c0_34 = arith.constant 0 : index
      %c0_35 = arith.constant 0 : index
      %49 = vector.load %arg8[%c0_34, %c0_35] : memref<1x128xf32, #tpu.memory_space<vmem>>, vector<1x128xf32>
      tpu.vector_store %arg8[%c0_34, %c0_35], %48 {strides = array<i32>} : memref<1x128xf32, #tpu.memory_space<vmem>>, vector<1x128xf32>,
    } else {
    }
    %c24_i32 = arith.constant 24 : i32
    %3 = arith.muli %arg1, %c24_i32 : i32
    %4 = tpu.assume_multiple %3, 24 : i32
    %c0_i32_1 = arith.constant 0 : i32
    %5 = arith.addi %4, %c0_i32_1 : i32
    %c0 = arith.constant 0 : index
    %6 = arith.index_cast %5 : i32 to index
    %c0_2 = arith.constant 0 : index
    %c0_3 = arith.constant 0 : index
    %7 = vector.load %arg2[%c0, %6, %c0_2, %c0_3] : memref<1x27x24x128xbf16, #tpu.memory_space<vmem>>, vector<1x24x24x128xbf16>
    %8 = vector.shape_cast %7 : vector<1x24x24x128xbf16> to vector<24x24x128xbf16>
    %9 = vector.shape_cast %8 : vector<24x24x128xbf16> to vector<576x128xbf16>
    %c1_i32 = arith.constant 1 : i32
    %10 = arith.addi %4, %c1_i32 : i32
    %c0_4 = arith.constant 0 : index
    %11 = arith.index_cast %10 : i32 to index
    %c0_5 = arith.constant 0 : index
    %c0_6 = arith.constant 0 : index
    %12 = vector.load %arg2[%c0_4, %11, %c0_5, %c0_6] : memref<1x27x24x128xbf16, #tpu.memory_space<vmem>>, vector<1x24x24x128xbf16>
    %13 = vector.shape_cast %12 : vector<1x24x24x128xbf16> to vector<24x24x128xbf16>
    %14 = vector.shape_cast %13 : vector<24x24x128xbf16> to vector<576x128xbf16>
    %c2_i32 = arith.constant 2 : i32
    %15 = arith.addi %4, %c2_i32 : i32
    %c0_7 = arith.constant 0 : index
    %16 = arith.index_cast %15 : i32 to index
    %c0_8 = arith.constant 0 : index
    %c0_9 = arith.constant 0 : index
    %17 = vector.load %arg2[%c0_7, %16, %c0_8, %c0_9] : memref<1x27x24x128xbf16, #tpu.memory_space<vmem>>, vector<1x24x24x128xbf16>
    %18 = vector.shape_cast %17 : vector<1x24x24x128xbf16> to vector<24x24x128xbf16>
    %19 = vector.shape_cast %18 : vector<24x24x128xbf16> to vector<576x128xbf16>
    %c3_i32 = arith.constant 3 : i32
    %20 = arith.addi %4, %c3_i32 : i32
    %c0_10 = arith.constant 0 : index
    %21 = arith.index_cast %20 : i32 to index
    %c0_11 = arith.constant 0 : index
    %c0_12 = arith.constant 0 : index
    %22 = vector.load %arg2[%c0_10, %21, %c0_11, %c0_12] : memref<1x27x24x128xbf16, #tpu.memory_space<vmem>>, vector<1x24x24x128xbf16>
    %23 = vector.shape_cast %22 : vector<1x24x24x128xbf16> to vector<24x24x128xbf16>
    %24 = vector.shape_cast %23 : vector<24x24x128xbf16> to vector<576x128xbf16>
    %25 = tpu.concatenate %9, %14, %19, %24 in 1 : vector<576x128xbf16>, vector<576x128xbf16>, vector<576x128xbf16>, vector<576x128xbf16> -> vector<576x512xbf16>
    %c0_13 = arith.constant 0 : index
    %c0_14 = arith.constant 0 : index
    %26 = vector.load %arg3[%c0_13, %c0_14] : memref<512x128xbf16, #tpu.memory_space<vmem>>, vector<512x128xbf16>
    %cst = arith.constant dense<0.000000e+00> : vector<576x128xf32>
    %27 = tpu.matmul %25, %26, %cst {dimension_numbers = #tpu.dot_dimension_numbers<[1], [0], [0], [1], [0, 0, 1, 1], [], []>} : vector<576x512xbf16>, vector<512x128xbf16>, vector<576x128xf32> -> vector<576x128xf32>
    %28 = arith.truncf %27 : vector<576x128xf32> to vector<576x128xbf16>
    %c0_15 = arith.constant 0 : index
    %c0_16 = arith.constant 0 : index
    %c0_17 = arith.constant 0 : index
    %29 = vector.load %arg4[%c0_15, %c0_16, %c0_17] : memref<1x576x128xbf16, #tpu.memory_space<vmem>>, vector<1x576x128xbf16>
    %30 = vector.shape_cast %29 : vector<1x576x128xbf16> to vector<576x128xbf16>
    %31 = vector.shape_cast %28 : vector<576x128xbf16> to vector<1x576x128xbf16>
    tpu.vector_store %arg4[%c0_15, %c0_16, %c0_17], %31 {strides = array<i32>} : memref<1x576x128xbf16, #tpu.memory_space<vmem>>, vector<1x576x128xbf16>,
    %c0_18 = arith.constant 0 : index
    %c0_19 = arith.constant 0 : index
    %32 = vector.load %arg7[%c0_18, %c0_19] : memref<1x128xf32, #tpu.memory_space<vmem>>, vector<1x128xf32>
    %cst_20 = arith.constant dense<0.000000e+00> : vector<128xf32>
    %33 = vector.multi_reduction <add>, %27, %cst_20 [0] : vector<576x128xf32> to vector<128xf32>
    %34 = vector.shape_cast %33 : vector<128xf32> to vector<1x128xf32>
    %35 = arith.addf %32, %34 : vector<1x128xf32>
    %c0_21 = arith.constant 0 : index
    %c0_22 = arith.constant 0 : index
    %36 = vector.load %arg7[%c0_21, %c0_22] : memref<1x128xf32, #tpu.memory_space<vmem>>, vector<1x128xf32>
    tpu.vector_store %arg7[%c0_21, %c0_22], %35 {strides = array<i32>} : memref<1x128xf32, #tpu.memory_space<vmem>>, vector<1x128xf32>,
    %c0_23 = arith.constant 0 : index
    %c0_24 = arith.constant 0 : index
    %37 = vector.load %arg8[%c0_23, %c0_24] : memref<1x128xf32, #tpu.memory_space<vmem>>, vector<1x128xf32>
    %38 = arith.mulf %27, %27 : vector<576x128xf32>
    %cst_25 = arith.constant dense<0.000000e+00> : vector<128xf32>
    %39 = vector.multi_reduction <add>, %38, %cst_25 [0] : vector<576x128xf32> to vector<128xf32>
    %40 = vector.shape_cast %39 : vector<128xf32> to vector<1x128xf32>
    %41 = arith.addf %37, %40 : vector<1x128xf32>
    %c0_26 = arith.constant 0 : index
    %c0_27 = arith.constant 0 : index
    %42 = vector.load %arg8[%c0_26, %c0_27] : memref<1x128xf32, #tpu.memory_space<vmem>>, vector<1x128xf32>
    tpu.vector_store %arg8[%c0_26, %c0_27], %41 {strides = array<i32>} : memref<1x128xf32, #tpu.memory_space<vmem>>, vector<1x128xf32>,
    %c0_i32_28 = arith.constant 0 : i32
    %43 = arith.cmpi eq, %arg1, %c0_i32_28 : i32
    %44 = arith.extui %43 : i1 to i32
    %c0_i32_29 = arith.constant 0 : i32
    %45 = arith.cmpi ne, %44, %c0_i32_29 : i32
    scf.if %45 {
      %c0_30 = arith.constant 0 : index
      %c0_31 = arith.constant 0 : index
      %46 = vector.load %arg7[%c0_30, %c0_31] : memref<1x128xf32, #tpu.memory_space<vmem>>, vector<1x128xf32>
      %c0_32 = arith.constant 0 : index
      %c0_33 = arith.constant 0 : index
      %c0_34 = arith.constant 0 : index
      %47 = vector.load %arg5[%c0_32, %c0_33, %c0_34] : memref<1x1x128xf32, #tpu.memory_space<vmem>>, vector<1x1x128xf32>
      %48 = vector.shape_cast %47 : vector<1x1x128xf32> to vector<1x128xf32>
      %49 = vector.shape_cast %46 : vector<1x128xf32> to vector<1x1x128xf32>
      tpu.vector_store %arg5[%c0_32, %c0_33, %c0_34], %49 {strides = array<i32>} : memref<1x1x128xf32, #tpu.memory_space<vmem>>, vector<1x1x128xf32>,
      %c0_35 = arith.constant 0 : index
      %c0_36 = arith.constant 0 : index
      %50 = vector.load %arg8[%c0_35, %c0_36] : memref<1x128xf32, #tpu.memory_space<vmem>>, vector<1x128xf32>
      %c0_37 = arith.constant 0 : index
      %c0_38 = arith.constant 0 : index
      %c0_39 = arith.constant 0 : index
      %51 = vector.load %arg6[%c0_37, %c0_38, %c0_39] : memref<1x1x128xf32, #tpu.memory_space<vmem>>, vector<1x1x128xf32>
      %52 = vector.shape_cast %51 : vector<1x1x128xf32> to vector<1x128xf32>
      %53 = vector.shape_cast %50 : vector<1x128xf32> to vector<1x1x128xf32>
      tpu.vector_store %arg6[%c0_37, %c0_38, %c0_39], %53 {strides = array<i32>} : memref<1x1x128xf32, #tpu.memory_space<vmem>>, vector<1x1x128xf32>,
    } else {
    }
    return
  }
  func.func @transform_0(%arg0: i32, %arg1: i32) -> (i32, i32, i32, i32) {
    %c0_i32 = arith.constant 0 : i32
    %c0_i32_0 = arith.constant 0 : i32
    %c0_i32_1 = arith.constant 0 : i32
    %c0_i32_2 = arith.constant 0 : i32
    return %arg0, %c0_i32, %c0_i32_0, %c0_i32_1 : i32, i32, i32, i32
  }
  func.func @transform_1(%arg0: i32, %arg1: i32) -> (i32, i32) {
    %c0_i32 = arith.constant 0 : i32
    %c0_i32_0 = arith.constant 0 : i32
    %c0_i32_1 = arith.constant 0 : i32
    return %c0_i32, %c0_i32_0 : i32, i32
  }
  func.func @transform_2(%arg0: i32, %arg1: i32) -> (i32, i32, i32) {
    %c0_i32 = arith.constant 0 : i32
    %c0_i32_0 = arith.constant 0 : i32
    return %arg0, %arg1, %c0_i32 : i32, i32, i32
  }
  func.func @transform_3(%arg0: i32, %arg1: i32) -> (i32, i32, i32) {
    %c0_i32 = arith.constant 0 : i32
    %c0_i32_0 = arith.constant 0 : i32
    %c0_i32_1 = arith.constant 0 : i32
    return %arg0, %c0_i32, %c0_i32_0 : i32, i32, i32
  }
  func.func @transform_4(%arg0: i32, %arg1: i32) -> (i32, i32, i32) {
    %c0_i32 = arith.constant 0 : i32
    %c0_i32_0 = arith.constant 0 : i32
    %c0_i32_1 = arith.constant 0 : i32
    return %arg0, %c0_i32, %c0_i32_0 : i32, i32, i32
  }
}

</mosaic_0001>

<llo_original>
// kernel: tpu_custom_call.1
$region0: #{tpu_custom_call.1}
  #allocation0 [shape = 'u32[]', space=smem, size = 0x4, offset = 0x4, fixed_abs, tag = 'smem constant byte address 0x4 - core index']
  #allocation1 [shape = 'u32[72,128]{1,0:T(1,128)}', space=vmem, size = 0x9000, scoped, tag = 'internal scratch']
  #allocation2 [shape = 'f32[1,128]{1,0:T(1,128)}', space=vmem, size = 0x200, scoped, tag = 'scratch operand']
  #allocation3 [shape = 'f32[1,128]{1,0:T(1,128)}', space=vmem, size = 0x200, scoped, tag = 'scratch operand']
  %s0 = inlined_call_operand.hbm [shape: bf16[2,27,24,128], index: 0, kind: input, shape index: {}]
  %s1 = inlined_call_operand.hbm [shape: bf16[512,128], index: 1, kind: input, shape index: {}]
  %s2 = inlined_call_operand.hbm [shape: bf16[2,576,128], index: 2, kind: output, shape index: {0}]
  %s3 = inlined_call_operand.hbm [shape: f32[2,1,128], index: 3, kind: output, shape index: {1}]
  %s4 = inlined_call_operand.hbm [shape: f32[2,1,128], index: 4, kind: output, shape index: {2}]
  %5 = xla_tuple %s2, %s3, %s4
  %s6 = sld [smem:[#allocation0]]
  $region73: #{tpu_custom_call.1} parent=0
    _
  %s8 = ssub.s32 1, %s6
  %s9 = scalar_select 0, %s8, %s6
  $region1: #{tpu_custom_call.1} parent=0
    #allocation4 [shape = 'u8[331776]{0}', space=vmem, size = 0x51000, scoped, tag = 'input window, operand 0']
    #allocation5 [shape = 's32[2]{0}', space=sflag, size = 0x8, scoped, tag = 'scoped memory for tpu_custom_call.1']
    #allocation6 [shape = 's32[2]{0}', space=sflag, size = 0x8, scoped, tag = 'scoped memory for tpu_custom_call.1']
    #allocation7 [shape = 'u8[131072]{0}', space=vmem, size = 0x20000, scoped, tag = 'input window, operand 1, single buffered']
    #allocation8 [shape = 's32[1]{0}', space=sflag, size = 0x4, scoped, tag = 'scoped memory for tpu_custom_call.1']
    #allocation9 [shape = 'u8[294912]{0}', space=vmem, size = 0x48000, scoped, tag = 'output window, operand 0']
    #allocation10 [shape = 'u8[1024]{0}', space=vmem, size = 0x400, scoped, tag = 'output window, operand 1']
    #allocation11 [shape = 's32[2]{0}', space=sflag, size = 0x8, scoped, tag = 'scoped memory for tpu_custom_call.1']
    #allocation12 [shape = 'u8[1024]{0}', space=vmem, size = 0x400, scoped, tag = 'output window, operand 2']
    %10 = vsyncpa [#allocation5], 0
    %s11 = scalar_lea.sflag [#allocation5], 1
    %12 = vsyncpa %s11, 0
    %13 = vsyncpa [#allocation8], 0
    %14 = vsyncpa [#allocation6], 0
    %s15 = scalar_lea.sflag [#allocation6], 1
    %16 = vsyncpa %s15, 0
    %17 = vsyncpa [#allocation11], 0
    %s18 = scalar_lea.sflag [#allocation11], 1
    %19 = vsyncpa %s18, 0
    loop: start=0, step=1, limit=4
    $region2: #{tpu_custom_call.1} parent=1 // loop_pre_header
      _
    $region3: #{tpu_custom_call.1} parent=1 // loop_header
      %s21 = sphi 0, %s25
      %p22 = scmp.ge.s32.totalorder %s21, 4
      %s28 = sphi 0, %s40
      %s29 = sphi 0, %s36
      %s30 = sphi 0, %s28
      %s31 = sphi 0, %s29
      %s32 = sphi 0, %s30
      %s33 = sphi 0, %s31
      %s43 = sphi 0, %s45
      %s46 = sphi 0, %s43
      %s47 = sphi 0, %s46
      %s63 = sphi 0, %s47
      %s67 = sphi 0, %s67
      %s69 = sphi 0, %s67
      %s70 = sphi 0, %s69
      %s84 = sphi 0, %s70
      %s92 = sphi 0, %s94
      %s95 = sphi 0, %s92
      %s96 = sphi 0, %s95
      %s112 = sphi 0, %s96
      %s118 = sphi 0, %s120
      %s121 = sphi 0, %s118
      %s122 = sphi 0, %s121
      %s138 = sphi 0, %s122
      %s144 = sphi 0, %s146
      %s147 = sphi 0, %s144
      %s148 = sphi 0, %s147
      %s164 = sphi 0, %s148
    $region4: #{tpu_custom_call.1} parent=1 // loop_header_branch
      %24 = sbr.rel (%p22) target = $region8
    $region5: #{tpu_custom_call.1} parent=1 // loop_body
      %s26 = ssub.s32 %s21, 1
      %s27 = ssub.s32 %s21, 2
      %s34 = sadd.s32 1, %s29
      %p35 = scmp.ge.s32.totalorder %s34, 1
      %s36 = scalar_select %p35, 0, %s34
      %s37 = sadd.s32 1, %s28
      %s38 = scalar_select %p35, %s37, %s28
      %p39 = scmp.ge.s32.totalorder %s38, 2
      %s40 = scalar_select %p39, 0, %s38
      %s41 = ssub.s32 %s28, %s40
      %p42 = scmp.eq.s32.totalorder %s41, 0
      %s44 = sadd.s32 %s43, 1
      %s45 = scalar_select %p42, %s43, %s44
      %p48 = pneg %p42
      %p49 = scmp.eq.s32.totalorder %s21, 1
      %p50 = por %p48, %p49
      %p51 = scmp.ne.s32.totalorder %s43, %s46
      %p52 = scmp.eq.s32.totalorder %s21, 0
      %p53 = por %p51, %p52
      %p54 = scmp.ne.s32.totalorder %s43, %s46
      %p55 = scmp.eq.s32.totalorder %s26, 1
      %p56 = por %p54, %p55
      %p57 = scmp.ne.s32.totalorder %s46, %s47
      %p58 = scmp.eq.s32.totalorder %s26, 0
      %p59 = por %p57, %p58
      %p60 = scmp.ne.s32.totalorder %s46, %s47
      %p61 = scmp.eq.s32.totalorder %s27, 1
      %p62 = por %p60, %p61
      %p64 = scmp.ne.s32.totalorder %s47, %s63
      %p65 = scmp.eq.s32.totalorder %s27, 0
      %p66 = por %p64, %p65
      %s68 = sadd.s32 %s67, 1
      %p71 = scmp.eq.s32.totalorder %s21, 1
      %p72 = scmp.ne.s32.totalorder %s67, %s69
      %p73 = scmp.eq.s32.totalorder %s21, 0
      %p74 = por %p72, %p73
      %p75 = scmp.ne.s32.totalorder %s67, %s69
      %p76 = scmp.eq.s32.totalorder %s26, 1
      %p77 = por %p75, %p76
      %p78 = scmp.ne.s32.totalorder %s69, %s70
      %p79 = scmp.eq.s32.totalorder %s26, 0
      %p80 = por %p78, %p79
      %p81 = scmp.ne.s32.totalorder %s69, %s70
      %p82 = scmp.eq.s32.totalorder %s27, 1
      %p83 = por %p81, %p82
      %p85 = scmp.ne.s32.totalorder %s70, %s84
      %p86 = scmp.eq.s32.totalorder %s27, 0
      %p87 = por %p85, %p86
      %s88 = ssub.s32 %s28, %s40
      %s89 = ssub.s32 %s29, %s36
      %s90 = sor.u32 %s88, %s89
      %p91 = scmp.eq.s32.totalorder %s90, 0
      %s93 = sadd.s32 %s92, 1
      %s94 = scalar_select %p91, %s92, %s93
      %p97 = pneg %p91
      %p98 = scmp.eq.s32.totalorder %s21, 1
      %p99 = por %p97, %p98
      %p100 = scmp.ne.s32.totalorder %s92, %s95
      %p101 = scmp.eq.s32.totalorder %s21, 0
      %p102 = por %p100, %p101
      %p103 = scmp.ne.s32.totalorder %s92, %s95
      %p104 = scmp.eq.s32.totalorder %s26, 1
      %p105 = por %p103, %p104
      %p106 = scmp.ne.s32.totalorder %s95, %s96
      %p107 = scmp.eq.s32.totalorder %s26, 0
      %p108 = por %p106, %p107
      %p109 = scmp.ne.s32.totalorder %s95, %s96
      %p110 = scmp.eq.s32.totalorder %s27, 1
      %p111 = por %p109, %p110
      %p113 = scmp.ne.s32.totalorder %s96, %s112
      %p114 = scmp.eq.s32.totalorder %s27, 0
      %p115 = por %p113, %p114
      %s116 = ssub.s32 %s28, %s40
      %p117 = scmp.eq.s32.totalorder %s116, 0
      %s119 = sadd.s32 %s118, 1
      %s120 = scalar_select %p117, %s118, %s119
      %p123 = pneg %p117
      %p124 = scmp.eq.s32.totalorder %s21, 1
      %p125 = por %p123, %p124
      %p126 = scmp.ne.s32.totalorder %s118, %s121
      %p127 = scmp.eq.s32.totalorder %s21, 0
      %p128 = por %p126, %p127
      %p129 = scmp.ne.s32.totalorder %s118, %s121
      %p130 = scmp.eq.s32.totalorder %s26, 1
      %p131 = por %p129, %p130
      %p132 = scmp.ne.s32.totalorder %s121, %s122
      %p133 = scmp.eq.s32.totalorder %s26, 0
      %p134 = por %p132, %p133
      %p135 = scmp.ne.s32.totalorder %s121, %s122
      %p136 = scmp.eq.s32.totalorder %s27, 1
      %p137 = por %p135, %p136
      %p139 = scmp.ne.s32.totalorder %s122, %s138
      %p140 = scmp.eq.s32.totalorder %s27, 0
      %p141 = por %p139, %p140
      %s142 = ssub.s32 %s28, %s40
      %p143 = scmp.eq.s32.totalorder %s142, 0
      %s145 = sadd.s32 %s144, 1
      %s146 = scalar_select %p143, %s144, %s145
      %p149 = pneg %p143
      %p150 = scmp.eq.s32.totalorder %s21, 1
      %p151 = por %p149, %p150
      %p152 = scmp.ne.s32.totalorder %s144, %s147
      %p153 = scmp.eq.s32.totalorder %s21, 0
      %p154 = por %p152, %p153
      %p155 = scmp.ne.s32.totalorder %s144, %s147
      %p156 = scmp.eq.s32.totalorder %s26, 1
      %p157 = por %p155, %p156
      %p158 = scmp.ne.s32.totalorder %s147, %s148
      %p159 = scmp.eq.s32.totalorder %s26, 0
      %p160 = por %p158, %p159
      %p161 = scmp.ne.s32.totalorder %s147, %s148
      %p162 = scmp.eq.s32.totalorder %s27, 1
      %p163 = por %p161, %p162
      %p165 = scmp.ne.s32.totalorder %s148, %s164
      %p166 = scmp.eq.s32.totalorder %s27, 0
      %p167 = por %p165, %p166
      %p168 = scmp.le.s32.totalorder 1, %s21
      %p169 = scmp.lt.s32.totalorder %s21, 3
      %p170 = pnand %p168, %p169
      %p171 = pneg %p170
      // Predicated region
      $region9: #{tpu_custom_call.1} parent=5 // pred_check
        _
      $region10: #{tpu_custom_call.1} parent=5 // pred_check_branch
        %173 = sbr.rel (%p170) target = $region12
      $region11: #{tpu_custom_call.1} parent=5 // pred_region
        %s174 = ssub.s32 %s21, 1
        // Predicated region
        $region13: #{tpu_custom_call.1} parent=11 // pred_check
          %p175 = pneg %p80
        $region14: #{tpu_custom_call.1} parent=11 // pred_check_branch
          %177 = sbr.rel (%p175) target = $region16
        $region15: #{tpu_custom_call.1} parent=11 // pred_region
          %179 = vsyncadd [#allocation8], 0
          %s180 = sshll.u32 %s1, 4
          %s181 = int_to_ptr.hbm [resolvable:$true] %s180
          %s182 = sshll.u32 [#allocation7], 4
          %s183 = int_to_ptr.vmem [resolvable:$true] %s182
          %188 = dma.hbm_to_vmem [thread:$0]  %s181, 4096, %s183, [#allocation8], 64, 64, 4
        $region16: #{tpu_custom_call.1} parent=11 // pred_fallthru
          _
      $region12: #{tpu_custom_call.1} parent=5 // pred_fallthru
        _
      %p189 = scmp.lt.s32.totalorder %s21, 2
      // Predicated region
      $region17: #{tpu_custom_call.1} parent=5 // pred_check
        %p190 = pneg %p189
      $region18: #{tpu_custom_call.1} parent=5 // pred_check_branch
        %192 = sbr.rel (%p190) target = $region20
      $region19: #{tpu_custom_call.1} parent=5 // pred_region
        // Predicated region
        $region21: #{tpu_custom_call.1} parent=19 // pred_check
          %p193 = pneg %p53
        $region22: #{tpu_custom_call.1} parent=19 // pred_check_branch
          %195 = sbr.rel (%p193) target = $region24
        $region23: #{tpu_custom_call.1} parent=19 // pred_region
          %s196 = sand.u32 %s43, 1
          %s197 = scalar_lea.sflag [#allocation5], %s196
          %s198 = sand.u32 %s43, 1
          %s199 = smul.addr %s198, 324
          %s200 = scalar_lea.vmem [#allocation4], %s199
          %202 = vsyncadd %s197, 0
          %s203 = smul.addr %s28, 81
          %s204 = smul.addr %s203, 4
          %s205 = scalar_lea.hbm %s0, %s204
          %s206 = sshll.u32 %s205, 4
          %s207 = int_to_ptr.hbm [resolvable:$true] %s206
          %s208 = sshll.u32 %s200, 4
          %s209 = int_to_ptr.vmem [resolvable:$true] %s208
          %214 = dma.hbm_to_vmem [thread:$0]  %s207, 5184, %s209, %s197, 64, 64, 4
        $region24: #{tpu_custom_call.1} parent=19 // pred_fallthru
          _
      $region20: #{tpu_custom_call.1} parent=5 // pred_fallthru
        _
      %p215 = scmp.le.s32.totalorder 1, %s21
      %p216 = scmp.lt.s32.totalorder %s21, 3
      %p217 = pnand %p215, %p216
      %p218 = pneg %p217
      // Predicated region
      $region25: #{tpu_custom_call.1} parent=5 // pred_check
        _
      $region26: #{tpu_custom_call.1} parent=5 // pred_check_branch
        %220 = sbr.rel (%p217) target = $region28
      $region27: #{tpu_custom_call.1} parent=5 // pred_region
        %s221 = ssub.s32 %s21, 1
        %s222 = sand.u32 %s46, 1
        %s223 = scalar_lea.sflag [#allocation5], %s222
        %s224 = sand.u32 %s46, 1
        %s225 = smul.addr %s224, 324
        %s226 = scalar_lea.vmem [#allocation4], %s225
        // Predicated region
        $region29: #{tpu_custom_call.1} parent=27 // pred_check
          %p227 = pneg %p59
        $region30: #{tpu_custom_call.1} parent=27 // pred_check_branch
          %229 = sbr.rel (%p227) target = $region32
        $region31: #{tpu_custom_call.1} parent=27 // pred_region
          %231 = dma.done %s223, 5184
        $region32: #{tpu_custom_call.1} parent=27 // pred_fallthru
          _
        // Predicated region
        $region33: #{tpu_custom_call.1} parent=27 // pred_check
          %p232 = pneg %p80
        $region34: #{tpu_custom_call.1} parent=27 // pred_check_branch
          %234 = sbr.rel (%p232) target = $region36
        $region35: #{tpu_custom_call.1} parent=27 // pred_region
          %236 = dma.done [#allocation8], 4096
        $region36: #{tpu_custom_call.1} parent=27 // pred_fallthru
          _
        %s237 = sand.u32 %s46, 1
        %s238 = scalar_lea.sflag [#allocation5], %s237
        %s239 = sand.u32 %s46, 1
        %s240 = smul.addr %s239, 324
        %s241 = scalar_lea.vmem [#allocation4], %s240
        %p242 = pneg %p59
        %p243 = pneg %p56
        %p244 = pneg %p80
        %p245 = pneg %p77
        %p246 = pneg %p108
        %p247 = pneg %p105
        %s248 = sand.u32 %s95, 1
        %s249 = scalar_lea.sflag [#allocation6], %s248
        %s250 = sand.u32 %s95, 1
        %s251 = smul.addr %s250, 288
        %s252 = scalar_lea.vmem [#allocation9], %s251
        %p253 = pneg %p134
        %p254 = pneg %p131
        %s255 = sand.u32 %s26, 1
        %s256 = scalar_lea.sflag [#allocation11], %s255
        %s257 = sand.u32 %s121, 1
        %s258 = scalar_lea.vmem [#allocation10], %s257
        %p259 = pneg %p160
        %p260 = pneg %p157
        %s261 = sand.u32 %s26, 1
        %s262 = scalar_lea.sflag [#allocation11], %s261
        %s263 = sand.u32 %s147, 1
        %s264 = scalar_lea.vmem [#allocation12], %s263
        %s265 = smul.u32 72, %s31
        %p266 = scmp.eq.s32.totalorder %s31, 0
        // Predicated region
        $region37: #{tpu_custom_call.1} parent=27 // pred_check
          %p267 = pneg %p266
        $region38: #{tpu_custom_call.1} parent=27 // pred_check_branch
          %269 = sbr.rel (%p267) target = $region40
        $region39: #{tpu_custom_call.1} parent=27 // pred_region
          %270 = vst [vmem:[#allocation2] sm:$0x1] 0.0
          %271 = vst [vmem:[#allocation3] sm:$0x1] 0.0
        $region40: #{tpu_custom_call.1} parent=27 // pred_fallthru
          _
        %s272 = smul.u32 %s31, 24
        %s273 = smul.u32 %s272, 3
        %s274 = smul.addr %s273, 4
        %s275 = scalar_lea.vmem %s226, %s274 [#allocation4]
        %v276 = vld [vmem:[%s275] sm:$0xf]
        %v277 = vld [vmem:[%s275 + $0x4] sm:$0xf]
        %v278 = vld [vmem:[%s275 + $0x8] sm:$0xf]
        %v279 = vld [vmem:[%s275 + $0xc] sm:$0xf]
        %v280 = vld [vmem:[%s275 + $0x10] sm:$0xf]
        %v281 = vld [vmem:[%s275 + $0x14] sm:$0xf]
        %v282 = vld [vmem:[%s275 + $0x18] sm:$0xf]
        %v283 = vld [vmem:[%s275 + $0x1c] sm:$0xf]
        %v284 = vld [vmem:[%s275 + $0x20] sm:$0xf]
        %v285 = vld [vmem:[%s275 + $0x24] sm:$0xf]
        %v286 = vld [vmem:[%s275 + $0x28] sm:$0xf]
        %v287 = vld [vmem:[%s275 + $0x2c] sm:$0xf]
        %v288 = vld [vmem:[%s275 + $0x30] sm:$0xf]
        %v289 = vld [vmem:[%s275 + $0x34] sm:$0xf]
        %v290 = vld [vmem:[%s275 + $0x38] sm:$0xf]
        %v291 = vld [vmem:[%s275 + $0x3c] sm:$0xf]
        %v292 = vld [vmem:[%s275 + $0x40] sm:$0xf]
        %v293 = vld [vmem:[%s275 + $0x44] sm:$0xf]
        %v294 = vld [vmem:[%s275 + $0x48] sm:$0xf]
        %v295 = vld [vmem:[%s275 + $0x4c] sm:$0xf]
        %v296 = vld [vmem:[%s275 + $0x50] sm:$0xf]
        %v297 = vld [vmem:[%s275 + $0x54] sm:$0xf]
        %v298 = vld [vmem:[%s275 + $0x58] sm:$0xf]
        %v299 = vld [vmem:[%s275 + $0x5c] sm:$0xf]
        %v300 = vld [vmem:[%s275 + $0x60] sm:$0xf]
        %v301 = vld [vmem:[%s275 + $0x64] sm:$0xf]
        %v302 = vld [vmem:[%s275 + $0x68] sm:$0xf]
        %v303 = vld [vmem:[%s275 + $0x6c] sm:$0xf]
        %v304 = vld [vmem:[%s275 + $0x70] sm:$0xf]
        %v305 = vld [vmem:[%s275 + $0x74] sm:$0xf]
        %v306 = vld [vmem:[%s275 + $0x78] sm:$0xf]
        %v307 = vld [vmem:[%s275 + $0x7c] sm:$0xf]
        %v308 = vld [vmem:[%s275 + $0x80] sm:$0xf]
        %v309 = vld [vmem:[%s275 + $0x84] sm:$0xf]
        %v310 = vld [vmem:[%s275 + $0x88] sm:$0xf]
        %v311 = vld [vmem:[%s275 + $0x8c] sm:$0xf]
        %v312 = vld [vmem:[%s275 + $0x90] sm:$0xf]
        %v313 = vld [vmem:[%s275 + $0x94] sm:$0xf]
        %v314 = vld [vmem:[%s275 + $0x98] sm:$0xf]
        %v315 = vld [vmem:[%s275 + $0x9c] sm:$0xf]
        %v316 = vld [vmem:[%s275 + $0xa0] sm:$0xf]
        %v317 = vld [vmem:[%s275 + $0xa4] sm:$0xf]
        %v318 = vld [vmem:[%s275 + $0xa8] sm:$0xf]
        %v319 = vld [vmem:[%s275 + $0xac] sm:$0xf]
        %v320 = vld [vmem:[%s275 + $0xb0] sm:$0xf]
        %v321 = vld [vmem:[%s275 + $0xb4] sm:$0xf]
        %v322 = vld [vmem:[%s275 + $0xb8] sm:$0xf]
        %v323 = vld [vmem:[%s275 + $0xbc] sm:$0xf]
        %v324 = vld [vmem:[%s275 + $0xc0] sm:$0xf]
        %v325 = vld [vmem:[%s275 + $0xc4] sm:$0xf]
        %v326 = vld [vmem:[%s275 + $0xc8] sm:$0xf]
        %v327 = vld [vmem:[%s275 + $0xcc] sm:$0xf]
        %v328 = vld [vmem:[%s275 + $0xd0] sm:$0xf]
        %v329 = vld [vmem:[%s275 + $0xd4] sm:$0xf]
        %v330 = vld [vmem:[%s275 + $0xd8] sm:$0xf]
        %v331 = vld [vmem:[%s275 + $0xdc] sm:$0xf]
        %v332 = vld [vmem:[%s275 + $0xe0] sm:$0xf]
        %v333 = vld [vmem:[%s275 + $0xe4] sm:$0xf]
        %v334 = vld [vmem:[%s275 + $0xe8] sm:$0xf]
        %v335 = vld [vmem:[%s275 + $0xec] sm:$0xf]
        %v336 = vld [vmem:[%s275 + $0xf0] sm:$0xf]
        %v337 = vld [vmem:[%s275 + $0xf4] sm:$0xf]
        %v338 = vld [vmem:[%s275 + $0xf8] sm:$0xf]
        %v339 = vld [vmem:[%s275 + $0xfc] sm:$0xf]
        %v340 = vld [vmem:[%s275 + $0x100] sm:$0xf]
        %v341 = vld [vmem:[%s275 + $0x104] sm:$0xf]
        %v342 = vld [vmem:[%s275 + $0x108] sm:$0xf]
        %v343 = vld [vmem:[%s275 + $0x10c] sm:$0xf]
        %v344 = vld [vmem:[%s275 + $0x110] sm:$0xf]
        %v345 = vld [vmem:[%s275 + $0x114] sm:$0xf]
        %v346 = vld [vmem:[%s275 + $0x118] sm:$0xf]
        %v347 = vld [vmem:[%s275 + $0x11c] sm:$0xf]
        %s348 = sadd.s32 %s272, 1
        %s349 = smul.u32 %s348, 3
        %s350 = smul.addr %s349, 4
        %s351 = scalar_lea.vmem %s226, %s350 [#allocation4]
        %v352 = vld [vmem:[%s351] sm:$0xf]
        %v353 = vld [vmem:[%s351 + $0x4] sm:$0xf]
        %v354 = vld [vmem:[%s351 + $0x8] sm:$0xf]
        %v355 = vld [vmem:[%s351 + $0xc] sm:$0xf]
        %v356 = vld [vmem:[%s351 + $0x10] sm:$0xf]
        %v357 = vld [vmem:[%s351 + $0x14] sm:$0xf]
        %v358 = vld [vmem:[%s351 + $0x18] sm:$0xf]
        %v359 = vld [vmem:[%s351 + $0x1c] sm:$0xf]
        %v360 = vld [vmem:[%s351 + $0x20] sm:$0xf]
        %v361 = vld [vmem:[%s351 + $0x24] sm:$0xf]
        %v362 = vld [vmem:[%s351 + $0x28] sm:$0xf]
        %v363 = vld [vmem:[%s351 + $0x2c] sm:$0xf]
        %v364 = vld [vmem:[%s351 + $0x30] sm:$0xf]
        %v365 = vld [vmem:[%s351 + $0x34] sm:$0xf]
        %v366 = vld [vmem:[%s351 + $0x38] sm:$0xf]
        %v367 = vld [vmem:[%s351 + $0x3c] sm:$0xf]
        %v368 = vld [vmem:[%s351 + $0x40] sm:$0xf]
        %v369 = vld [vmem:[%s351 + $0x44] sm:$0xf]
        %v370 = vld [vmem:[%s351 + $0x48] sm:$0xf]
        %v371 = vld [vmem:[%s351 + $0x4c] sm:$0xf]
        %v372 = vld [vmem:[%s351 + $0x50] sm:$0xf]
        %v373 = vld [vmem:[%s351 + $0x54] sm:$0xf]
        %v374 = vld [vmem:[%s351 + $0x58] sm:$0xf]
        %v375 = vld [vmem:[%s351 + $0x5c] sm:$0xf]
        %v376 = vld [vmem:[%s351 + $0x60] sm:$0xf]
        %v377 = vld [vmem:[%s351 + $0x64] sm:$0xf]
        %v378 = vld [vmem:[%s351 + $0x68] sm:$0xf]
        %v379 = vld [vmem:[%s351 + $0x6c] sm:$0xf]
        %v380 = vld [vmem:[%s351 + $0x70] sm:$0xf]
        %v381 = vld [vmem:[%s351 + $0x74] sm:$0xf]
        %v382 = vld [vmem:[%s351 + $0x78] sm:$0xf]
        %v383 = vld [vmem:[%s351 + $0x7c] sm:$0xf]
        %v384 = vld [vmem:[%s351 + $0x80] sm:$0xf]
        %v385 = vld [vmem:[%s351 + $0x84] sm:$0xf]
        %v386 = vld [vmem:[%s351 + $0x88] sm:$0xf]
        %v387 = vld [vmem:[%s351 + $0x8c] sm:$0xf]
        %v388 = vld [vmem:[%s351 + $0x90] sm:$0xf]
        %v389 = vld [vmem:[%s351 + $0x94] sm:$0xf]
        %v390 = vld [vmem:[%s351 + $0x98] sm:$0xf]
        %v391 = vld [vmem:[%s351 + $0x9c] sm:$0xf]
        %v392 = vld [vmem:[%s351 + $0xa0] sm:$0xf]
        %v393 = vld [vmem:[%s351 + $0xa4] sm:$0xf]
        %v394 = vld [vmem:[%s351 + $0xa8] sm:$0xf]
        %v395 = vld [vmem:[%s351 + $0xac] sm:$0xf]
        %v396 = vld [vmem:[%s351 + $0xb0] sm:$0xf]
        %v397 = vld [vmem:[%s351 + $0xb4] sm:$0xf]
        %v398 = vld [vmem:[%s351 + $0xb8] sm:$0xf]
        %v399 = vld [vmem:[%s351 + $0xbc] sm:$0xf]
        %v400 = vld [vmem:[%s351 + $0xc0] sm:$0xf]
        %v401 = vld [vmem:[%s351 + $0xc4] sm:$0xf]
        %v402 = vld [vmem:[%s351 + $0xc8] sm:$0xf]
        %v403 = vld [vmem:[%s351 + $0xcc] sm:$0xf]
        %v404 = vld [vmem:[%s351 + $0xd0] sm:$0xf]
        %v405 = vld [vmem:[%s351 + $0xd4] sm:$0xf]
        %v406 = vld [vmem:[%s351 + $0xd8] sm:$0xf]
        %v407 = vld [vmem:[%s351 + $0xdc] sm:$0xf]
        %v408 = vld [vmem:[%s351 + $0xe0] sm:$0xf]
        %v409 = vld [vmem:[%s351 + $0xe4] sm:$0xf]
        %v410 = vld [vmem:[%s351 + $0xe8] sm:$0xf]
        %v411 = vld [vmem:[%s351 + $0xec] sm:$0xf]
        %v412 = vld [vmem:[%s351 + $0xf0] sm:$0xf]
        %v413 = vld [vmem:[%s351 + $0xf4] sm:$0xf]
        %v414 = vld [vmem:[%s351 + $0xf8] sm:$0xf]
        %v415 = vld [vmem:[%s351 + $0xfc] sm:$0xf]
        %v416 = vld [vmem:[%s351 + $0x100] sm:$0xf]
        %v417 = vld [vmem:[%s351 + $0x104] sm:$0xf]
        %v418 = vld [vmem:[%s351 + $0x108] sm:$0xf]
        %v419 = vld [vmem:[%s351 + $0x10c] sm:$0xf]
        %v420 = vld [vmem:[%s351 + $0x110] sm:$0xf]
        %v421 = vld [vmem:[%s351 + $0x114] sm:$0xf]
        %v422 = vld [vmem:[%s351 + $0x118] sm:$0xf]
        %v423 = vld [vmem:[%s351 + $0x11c] sm:$0xf]
        %s424 = sadd.s32 %s272, 2
        %s425 = smul.u32 %s424, 3
        %s426 = smul.addr %s425, 4
        %s427 = scalar_lea.vmem %s226, %s426 [#allocation4]
        %v428 = vld [vmem:[%s427] sm:$0xf]
        %v429 = vld [vmem:[%s427 + $0x4] sm:$0xf]
        %v430 = vld [vmem:[%s427 + $0x8] sm:$0xf]
        %v431 = vld [vmem:[%s427 + $0xc] sm:$0xf]
        %v432 = vld [vmem:[%s427 + $0x10] sm:$0xf]
        %v433 = vld [vmem:[%s427 + $0x14] sm:$0xf]
        %v434 = vld [vmem:[%s427 + $0x18] sm:$0xf]
        %v435 = vld [vmem:[%s427 + $0x1c] sm:$0xf]
        %v436 = vld [vmem:[%s427 + $0x20] sm:$0xf]
        %v437 = vld [vmem:[%s427 + $0x24] sm:$0xf]
        %v438 = vld [vmem:[%s427 + $0x28] sm:$0xf]
        %v439 = vld [vmem:[%s427 + $0x2c] sm:$0xf]
        %v440 = vld [vmem:[%s427 + $0x30] sm:$0xf]
        %v441 = vld [vmem:[%s427 + $0x34] sm:$0xf]
        %v442 = vld [vmem:[%s427 + $0x38] sm:$0xf]
        %v443 = vld [vmem:[%s427 + $0x3c] sm:$0xf]
        %v444 = vld [vmem:[%s427 + $0x40] sm:$0xf]
        %v445 = vld [vmem:[%s427 + $0x44] sm:$0xf]
        %v446 = vld [vmem:[%s427 + $0x48] sm:$0xf]
        %v447 = vld [vmem:[%s427 + $0x4c] sm:$0xf]
        %v448 = vld [vmem:[%s427 + $0x50] sm:$0xf]
        %v449 = vld [vmem:[%s427 + $0x54] sm:$0xf]
        %v450 = vld [vmem:[%s427 + $0x58] sm:$0xf]
        %v451 = vld [vmem:[%s427 + $0x5c] sm:$0xf]
        %v452 = vld [vmem:[%s427 + $0x60] sm:$0xf]
        %v453 = vld [vmem:[%s427 + $0x64] sm:$0xf]
        %v454 = vld [vmem:[%s427 + $0x68] sm:$0xf]
        %v455 = vld [vmem:[%s427 + $0x6c] sm:$0xf]
        %v456 = vld [vmem:[%s427 + $0x70] sm:$0xf]
        %v457 = vld [vmem:[%s427 + $0x74] sm:$0xf]
        %v458 = vld [vmem:[%s427 + $0x78] sm:$0xf]
        %v459 = vld [vmem:[%s427 + $0x7c] sm:$0xf]
        %v460 = vld [vmem:[%s427 + $0x80] sm:$0xf]
        %v461 = vld [vmem:[%s427 + $0x84] sm:$0xf]
        %v462 = vld [vmem:[%s427 + $0x88] sm:$0xf]
        %v463 = vld [vmem:[%s427 + $0x8c] sm:$0xf]
        %v464 = vld [vmem:[%s427 + $0x90] sm:$0xf]
        %v465 = vld [vmem:[%s427 + $0x94] sm:$0xf]
        %v466 = vld [vmem:[%s427 + $0x98] sm:$0xf]
        %v467 = vld [vmem:[%s427 + $0x9c] sm:$0xf]
        %v468 = vld [vmem:[%s427 + $0xa0] sm:$0xf]
        %v469 = vld [vmem:[%s427 + $0xa4] sm:$0xf]
        %v470 = vld [vmem:[%s427 + $0xa8] sm:$0xf]
        %v471 = vld [vmem:[%s427 + $0xac] sm:$0xf]
        %v472 = vld [vmem:[%s427 + $0xb0] sm:$0xf]
        %v473 = vld [vmem:[%s427 + $0xb4] sm:$0xf]
        %v474 = vld [vmem:[%s427 + $0xb8] sm:$0xf]
        %v475 = vld [vmem:[%s427 + $0xbc] sm:$0xf]
        %v476 = vld [vmem:[%s427 + $0xc0] sm:$0xf]
        %v477 = vld [vmem:[%s427 + $0xc4] sm:$0xf]
        %v478 = vld [vmem:[%s427 + $0xc8] sm:$0xf]
        %v479 = vld [vmem:[%s427 + $0xcc] sm:$0xf]
        %v480 = vld [vmem:[%s427 + $0xd0] sm:$0xf]
        %v481 = vld [vmem:[%s427 + $0xd4] sm:$0xf]
        %v482 = vld [vmem:[%s427 + $0xd8] sm:$0xf]
        %v483 = vld [vmem:[%s427 + $0xdc] sm:$0xf]
        %v484 = vld [vmem:[%s427 + $0xe0] sm:$0xf]
        %v485 = vld [vmem:[%s427 + $0xe4] sm:$0xf]
        %v486 = vld [vmem:[%s427 + $0xe8] sm:$0xf]
        %v487 = vld [vmem:[%s427 + $0xec] sm:$0xf]
        %v488 = vld [vmem:[%s427 + $0xf0] sm:$0xf]
        %v489 = vld [vmem:[%s427 + $0xf4] sm:$0xf]
        %v490 = vld [vmem:[%s427 + $0xf8] sm:$0xf]
        %v491 = vld [vmem:[%s427 + $0xfc] sm:$0xf]
        %v492 = vld [vmem:[%s427 + $0x100] sm:$0xf]
        %v493 = vld [vmem:[%s427 + $0x104] sm:$0xf]
        %v494 = vld [vmem:[%s427 + $0x108] sm:$0xf]
        %v495 = vld [vmem:[%s427 + $0x10c] sm:$0xf]
        %v496 = vld [vmem:[%s427 + $0x110] sm:$0xf]
        %v497 = vld [vmem:[%s427 + $0x114] sm:$0xf]
        %v498 = vld [vmem:[%s427 + $0x118] sm:$0xf]
        %v499 = vld [vmem:[%s427 + $0x11c] sm:$0xf]
        %s500 = sadd.s32 %s272, 3
        %s501 = smul.u32 %s500, 3
        %s502 = smul.addr %s501, 4
        %s503 = scalar_lea.vmem %s226, %s502 [#allocation4]
        %v504 = vld [vmem:[%s503] sm:$0xf]
        %v505 = vld [vmem:[%s503 + $0x4] sm:$0xf]
        %v506 = vld [vmem:[%s503 + $0x8] sm:$0xf]
        %v507 = vld [vmem:[%s503 + $0xc] sm:$0xf]
        %v508 = vld [vmem:[%s503 + $0x10] sm:$0xf]
        %v509 = vld [vmem:[%s503 + $0x14] sm:$0xf]
        %v510 = vld [vmem:[%s503 + $0x18] sm:$0xf]
        %v511 = vld [vmem:[%s503 + $0x1c] sm:$0xf]
        %v512 = vld [vmem:[%s503 + $0x20] sm:$0xf]
        %v513 = vld [vmem:[%s503 + $0x24] sm:$0xf]
        %v514 = vld [vmem:[%s503 + $0x28] sm:$0xf]
        %v515 = vld [vmem:[%s503 + $0x2c] sm:$0xf]
        %v516 = vld [vmem:[%s503 + $0x30] sm:$0xf]
        %v517 = vld [vmem:[%s503 + $0x34] sm:$0xf]
        %v518 = vld [vmem:[%s503 + $0x38] sm:$0xf]
        %v519 = vld [vmem:[%s503 + $0x3c] sm:$0xf]
        %v520 = vld [vmem:[%s503 + $0x40] sm:$0xf]
        %v521 = vld [vmem:[%s503 + $0x44] sm:$0xf]
        %v522 = vld [vmem:[%s503 + $0x48] sm:$0xf]
        %v523 = vld [vmem:[%s503 + $0x4c] sm:$0xf]
        %v524 = vld [vmem:[%s503 + $0x50] sm:$0xf]
        %v525 = vld [vmem:[%s503 + $0x54] sm:$0xf]
        %v526 = vld [vmem:[%s503 + $0x58] sm:$0xf]
        %v527 = vld [vmem:[%s503 + $0x5c] sm:$0xf]
        %v528 = vld [vmem:[%s503 + $0x60] sm:$0xf]
        %v529 = vld [vmem:[%s503 + $0x64] sm:$0xf]
        %v530 = vld [vmem:[%s503 + $0x68] sm:$0xf]
        %v531 = vld [vmem:[%s503 + $0x6c] sm:$0xf]
        %v532 = vld [vmem:[%s503 + $0x70] sm:$0xf]
        %v533 = vld [vmem:[%s503 + $0x74] sm:$0xf]
        %v534 = vld [vmem:[%s503 + $0x78] sm:$0xf]
        %v535 = vld [vmem:[%s503 + $0x7c] sm:$0xf]
        %v536 = vld [vmem:[%s503 + $0x80] sm:$0xf]
        %v537 = vld [vmem:[%s503 + $0x84] sm:$0xf]
        %v538 = vld [vmem:[%s503 + $0x88] sm:$0xf]
        %v539 = vld [vmem:[%s503 + $0x8c] sm:$0xf]
        %v540 = vld [vmem:[%s503 + $0x90] sm:$0xf]
        %v541 = vld [vmem:[%s503 + $0x94] sm:$0xf]
        %v542 = vld [vmem:[%s503 + $0x98] sm:$0xf]
        %v543 = vld [vmem:[%s503 + $0x9c] sm:$0xf]
        %v544 = vld [vmem:[%s503 + $0xa0] sm:$0xf]
        %v545 = vld [vmem:[%s503 + $0xa4] sm:$0xf]
        %v546 = vld [vmem:[%s503 + $0xa8] sm:$0xf]
        %v547 = vld [vmem:[%s503 + $0xac] sm:$0xf]
        %v548 = vld [vmem:[%s503 + $0xb0] sm:$0xf]
        %v549 = vld [vmem:[%s503 + $0xb4] sm:$0xf]
        %v550 = vld [vmem:[%s503 + $0xb8] sm:$0xf]
        %v551 = vld [vmem:[%s503 + $0xbc] sm:$0xf]
        %v552 = vld [vmem:[%s503 + $0xc0] sm:$0xf]
        %v553 = vld [vmem:[%s503 + $0xc4] sm:$0xf]
        %v554 = vld [vmem:[%s503 + $0xc8] sm:$0xf]
        %v555 = vld [vmem:[%s503 + $0xcc] sm:$0xf]
        %v556 = vld [vmem:[%s503 + $0xd0] sm:$0xf]
        %v557 = vld [vmem:[%s503 + $0xd4] sm:$0xf]
        %v558 = vld [vmem:[%s503 + $0xd8] sm:$0xf]
        %v559 = vld [vmem:[%s503 + $0xdc] sm:$0xf]
        %v560 = vld [vmem:[%s503 + $0xe0] sm:$0xf]
        %v561 = vld [vmem:[%s503 + $0xe4] sm:$0xf]
        %v562 = vld [vmem:[%s503 + $0xe8] sm:$0xf]
        %v563 = vld [vmem:[%s503 + $0xec] sm:$0xf]
        %v564 = vld [vmem:[%s503 + $0xf0] sm:$0xf]
        %v565 = vld [vmem:[%s503 + $0xf4] sm:$0xf]
        %v566 = vld [vmem:[%s503 + $0xf8] sm:$0xf]
        %v567 = vld [vmem:[%s503 + $0xfc] sm:$0xf]
        %v568 = vld [vmem:[%s503 + $0x100] sm:$0xf]
        %v569 = vld [vmem:[%s503 + $0x104] sm:$0xf]
        %v570 = vld [vmem:[%s503 + $0x108] sm:$0xf]
        %v571 = vld [vmem:[%s503 + $0x10c] sm:$0xf]
        %v572 = vld [vmem:[%s503 + $0x110] sm:$0xf]
        %v573 = vld [vmem:[%s503 + $0x114] sm:$0xf]
        %v574 = vld [vmem:[%s503 + $0x118] sm:$0xf]
        %v575 = vld [vmem:[%s503 + $0x11c] sm:$0xf]
        %v648 = vunpack.c.l.b16 %v276
        %v649 = vunpack.c.l.b16 %v277
        %v650 = vunpack.c.l.b16 %v278
        %v651 = vunpack.c.l.b16 %v279
        %v652 = vunpack.c.l.b16 %v280
        %v653 = vunpack.c.l.b16 %v281
        %v654 = vunpack.c.l.b16 %v282
        %v655 = vunpack.c.l.b16 %v283
        %v656 = vunpack.c.l.b16 %v284
        %v657 = vunpack.c.l.b16 %v285
        %v658 = vunpack.c.l.b16 %v286
        %v659 = vunpack.c.l.b16 %v287
        %v660 = vunpack.c.l.b16 %v288
        %v661 = vunpack.c.l.b16 %v289
        %v662 = vunpack.c.l.b16 %v290
        %v663 = vunpack.c.l.b16 %v291
        %v664 = vunpack.c.l.b16 %v292
        %v665 = vunpack.c.l.b16 %v293
        %v666 = vunpack.c.l.b16 %v294
        %v667 = vunpack.c.l.b16 %v295
        %v668 = vunpack.c.l.b16 %v296
        %v669 = vunpack.c.l.b16 %v297
        %v670 = vunpack.c.l.b16 %v298
        %v671 = vunpack.c.l.b16 %v299
        %v672 = vunpack.c.l.b16 %v300
        %v673 = vunpack.c.l.b16 %v301
        %v674 = vunpack.c.l.b16 %v302
        %v675 = vunpack.c.l.b16 %v303
        %v676 = vunpack.c.l.b16 %v304
        %v677 = vunpack.c.l.b16 %v305
        %v678 = vunpack.c.l.b16 %v306
        %v679 = vunpack.c.l.b16 %v307
        %v680 = vunpack.c.l.b16 %v308
        %v681 = vunpack.c.l.b16 %v309
        %v682 = vunpack.c.l.b16 %v310
        %v683 = vunpack.c.l.b16 %v311
        %v684 = vunpack.c.l.b16 %v312
        %v685 = vunpack.c.l.b16 %v313
        %v686 = vunpack.c.l.b16 %v314
        %v687 = vunpack.c.l.b16 %v315
        %v688 = vunpack.c.l.b16 %v316
        %v689 = vunpack.c.l.b16 %v317
        %v690 = vunpack.c.l.b16 %v318
        %v691 = vunpack.c.l.b16 %v319
        %v692 = vunpack.c.l.b16 %v320
        %v693 = vunpack.c.l.b16 %v321
        %v694 = vunpack.c.l.b16 %v322
        %v695 = vunpack.c.l.b16 %v323
        %v696 = vunpack.c.l.b16 %v324
        %v697 = vunpack.c.l.b16 %v325
        %v698 = vunpack.c.l.b16 %v326
        %v699 = vunpack.c.l.b16 %v327
        %v700 = vunpack.c.l.b16 %v328
        %v701 = vunpack.c.l.b16 %v329
        %v702 = vunpack.c.l.b16 %v330
        %v703 = vunpack.c.l.b16 %v331
        %v704 = vunpack.c.l.b16 %v332
        %v705 = vunpack.c.l.b16 %v333
        %v706 = vunpack.c.l.b16 %v334
        %v707 = vunpack.c.l.b16 %v335
        %v708 = vunpack.c.l.b16 %v336
        %v709 = vunpack.c.l.b16 %v337
        %v710 = vunpack.c.l.b16 %v338
        %v711 = vunpack.c.l.b16 %v339
        %v712 = vunpack.c.l.b16 %v340
        %v713 = vunpack.c.l.b16 %v341
        %v714 = vunpack.c.l.b16 %v342
        %v715 = vunpack.c.l.b16 %v343
        %v716 = vunpack.c.l.b16 %v344
        %v717 = vunpack.c.l.b16 %v345
        %v718 = vunpack.c.l.b16 %v346
        %v719 = vunpack.c.l.b16 %v347
        %v720 = vpack.c.b16 %v649, %v648
        %v721 = vpack.c.b16 %v651, %v650
        %v722 = vpack.c.b16 %v653, %v652
        %v723 = vpack.c.b16 %v655, %v654
        %v724 = vpack.c.b16 %v657, %v656
        %v725 = vpack.c.b16 %v659, %v658
        %v726 = vpack.c.b16 %v661, %v660
        %v727 = vpack.c.b16 %v663, %v662
        %v728 = vpack.c.b16 %v665, %v664
        %v729 = vpack.c.b16 %v667, %v666
        %v730 = vpack.c.b16 %v669, %v668
        %v731 = vpack.c.b16 %v671, %v670
        %v732 = vpack.c.b16 %v673, %v672
        %v733 = vpack.c.b16 %v675, %v674
        %v734 = vpack.c.b16 %v677, %v676
        %v735 = vpack.c.b16 %v679, %v678
        %v736 = vpack.c.b16 %v681, %v680
        %v737 = vpack.c.b16 %v683, %v682
        %v738 = vpack.c.b16 %v685, %v684
        %v739 = vpack.c.b16 %v687, %v686
        %v740 = vpack.c.b16 %v689, %v688
        %v741 = vpack.c.b16 %v691, %v690
        %v742 = vpack.c.b16 %v693, %v692
        %v743 = vpack.c.b16 %v695, %v694
        %v744 = vpack.c.b16 %v697, %v696
        %v745 = vpack.c.b16 %v699, %v698
        %v746 = vpack.c.b16 %v701, %v700
        %v747 = vpack.c.b16 %v703, %v702
        %v748 = vpack.c.b16 %v705, %v704
        %v749 = vpack.c.b16 %v707, %v706
        %v750 = vpack.c.b16 %v709, %v708
        %v751 = vpack.c.b16 %v711, %v710
        %v752 = vpack.c.b16 %v713, %v712
        %v753 = vpack.c.b16 %v715, %v714
        %v754 = vpack.c.b16 %v717, %v716
        %v755 = vpack.c.b16 %v719, %v718
        %v864 = vunpack.c.l.b16 %v352
        %v865 = vunpack.c.l.b16 %v353
        %v866 = vunpack.c.l.b16 %v354
        %v867 = vunpack.c.l.b16 %v355
        %v868 = vunpack.c.l.b16 %v356
        %v869 = vunpack.c.l.b16 %v357
        %v870 = vunpack.c.l.b16 %v358
        %v871 = vunpack.c.l.b16 %v359
        %v872 = vunpack.c.l.b16 %v360
        %v873 = vunpack.c.l.b16 %v361
        %v874 = vunpack.c.l.b16 %v362
        %v875 = vunpack.c.l.b16 %v363
        %v876 = vunpack.c.l.b16 %v364
        %v877 = vunpack.c.l.b16 %v365
        %v878 = vunpack.c.l.b16 %v366
        %v879 = vunpack.c.l.b16 %v367
        %v880 = vunpack.c.l.b16 %v368
        %v881 = vunpack.c.l.b16 %v369
        %v882 = vunpack.c.l.b16 %v370
        %v883 = vunpack.c.l.b16 %v371
        %v884 = vunpack.c.l.b16 %v372
        %v885 = vunpack.c.l.b16 %v373
        %v886 = vunpack.c.l.b16 %v374
        %v887 = vunpack.c.l.b16 %v375
        %v888 = vunpack.c.l.b16 %v376
        %v889 = vunpack.c.l.b16 %v377
        %v890 = vunpack.c.l.b16 %v378
        %v891 = vunpack.c.l.b16 %v379
        %v892 = vunpack.c.l.b16 %v380
        %v893 = vunpack.c.l.b16 %v381
        %v894 = vunpack.c.l.b16 %v382
        %v895 = vunpack.c.l.b16 %v383
        %v896 = vunpack.c.l.b16 %v384
        %v897 = vunpack.c.l.b16 %v385
        %v898 = vunpack.c.l.b16 %v386
        %v899 = vunpack.c.l.b16 %v387
        %v900 = vunpack.c.l.b16 %v388
        %v901 = vunpack.c.l.b16 %v389
        %v902 = vunpack.c.l.b16 %v390
        %v903 = vunpack.c.l.b16 %v391
        %v904 = vunpack.c.l.b16 %v392
        %v905 = vunpack.c.l.b16 %v393
        %v906 = vunpack.c.l.b16 %v394
        %v907 = vunpack.c.l.b16 %v395
        %v908 = vunpack.c.l.b16 %v396
        %v909 = vunpack.c.l.b16 %v397
        %v910 = vunpack.c.l.b16 %v398
        %v911 = vunpack.c.l.b16 %v399
        %v912 = vunpack.c.l.b16 %v400
        %v913 = vunpack.c.l.b16 %v401
        %v914 = vunpack.c.l.b16 %v402
        %v915 = vunpack.c.l.b16 %v403
        %v916 = vunpack.c.l.b16 %v404
        %v917 = vunpack.c.l.b16 %v405
        %v918 = vunpack.c.l.b16 %v406
        %v919 = vunpack.c.l.b16 %v407
        %v920 = vunpack.c.l.b16 %v408
        %v921 = vunpack.c.l.b16 %v409
        %v922 = vunpack.c.l.b16 %v410
        %v923 = vunpack.c.l.b16 %v411
        %v924 = vunpack.c.l.b16 %v412
        %v925 = vunpack.c.l.b16 %v413
        %v926 = vunpack.c.l.b16 %v414
        %v927 = vunpack.c.l.b16 %v415
        %v928 = vunpack.c.l.b16 %v416
        %v929 = vunpack.c.l.b16 %v417
        %v930 = vunpack.c.l.b16 %v418
        %v931 = vunpack.c.l.b16 %v419
        %v932 = vunpack.c.l.b16 %v420
        %v933 = vunpack.c.l.b16 %v421
        %v934 = vunpack.c.l.b16 %v422
        %v935 = vunpack.c.l.b16 %v423
        %v936 = vpack.c.b16 %v865, %v864
        %v937 = vpack.c.b16 %v867, %v866
        %v938 = vpack.c.b16 %v869, %v868
        %v939 = vpack.c.b16 %v871, %v870
        %v940 = vpack.c.b16 %v873, %v872
        %v941 = vpack.c.b16 %v875, %v874
        %v942 = vpack.c.b16 %v877, %v876
        %v943 = vpack.c.b16 %v879, %v878
        %v944 = vpack.c.b16 %v881, %v880
        %v945 = vpack.c.b16 %v883, %v882
        %v946 = vpack.c.b16 %v885, %v884
        %v947 = vpack.c.b16 %v887, %v886
        %v948 = vpack.c.b16 %v889, %v888
        %v949 = vpack.c.b16 %v891, %v890
        %v950 = vpack.c.b16 %v893, %v892
        %v951 = vpack.c.b16 %v895, %v894
        %v952 = vpack.c.b16 %v897, %v896
        %v953 = vpack.c.b16 %v899, %v898
        %v954 = vpack.c.b16 %v901, %v900
        %v955 = vpack.c.b16 %v903, %v902
        %v956 = vpack.c.b16 %v905, %v904
        %v957 = vpack.c.b16 %v907, %v906
        %v958 = vpack.c.b16 %v909, %v908
        %v959 = vpack.c.b16 %v911, %v910
        %v960 = vpack.c.b16 %v913, %v912
        %v961 = vpack.c.b16 %v915, %v914
        %v962 = vpack.c.b16 %v917, %v916
        %v963 = vpack.c.b16 %v919, %v918
        %v964 = vpack.c.b16 %v921, %v920
        %v965 = vpack.c.b16 %v923, %v922
        %v966 = vpack.c.b16 %v925, %v924
        %v967 = vpack.c.b16 %v927, %v926
        %v968 = vpack.c.b16 %v929, %v928
        %v969 = vpack.c.b16 %v931, %v930
        %v970 = vpack.c.b16 %v933, %v932
        %v971 = vpack.c.b16 %v935, %v934
        %v1080 = vunpack.c.l.b16 %v428
        %v1081 = vunpack.c.l.b16 %v429
        %v1082 = vunpack.c.l.b16 %v430
        %v1083 = vunpack.c.l.b16 %v431
        %v1084 = vunpack.c.l.b16 %v432
        %v1085 = vunpack.c.l.b16 %v433
        %v1086 = vunpack.c.l.b16 %v434
        %v1087 = vunpack.c.l.b16 %v435
        %v1088 = vunpack.c.l.b16 %v436
        %v1089 = vunpack.c.l.b16 %v437
        %v1090 = vunpack.c.l.b16 %v438
        %v1091 = vunpack.c.l.b16 %v439
        %v1092 = vunpack.c.l.b16 %v440
        %v1093 = vunpack.c.l.b16 %v441
        %v1094 = vunpack.c.l.b16 %v442
        %v1095 = vunpack.c.l.b16 %v443
        %v1096 = vunpack.c.l.b16 %v444
        %v1097 = vunpack.c.l.b16 %v445
        %v1098 = vunpack.c.l.b16 %v446
        %v1099 = vunpack.c.l.b16 %v447
        %v1100 = vunpack.c.l.b16 %v448
        %v1101 = vunpack.c.l.b16 %v449
        %v1102 = vunpack.c.l.b16 %v450
        %v1103 = vunpack.c.l.b16 %v451
        %v1104 = vunpack.c.l.b16 %v452
        %v1105 = vunpack.c.l.b16 %v453
        %v1106 = vunpack.c.l.b16 %v454
        %v1107 = vunpack.c.l.b16 %v455
        %v1108 = vunpack.c.l.b16 %v456
        %v1109 = vunpack.c.l.b16 %v457
        %v1110 = vunpack.c.l.b16 %v458
        %v1111 = vunpack.c.l.b16 %v459
        %v1112 = vunpack.c.l.b16 %v460
        %v1113 = vunpack.c.l.b16 %v461
        %v1114 = vunpack.c.l.b16 %v462
        %v1115 = vunpack.c.l.b16 %v463
        %v1116 = vunpack.c.l.b16 %v464
        %v1117 = vunpack.c.l.b16 %v465
        %v1118 = vunpack.c.l.b16 %v466
        %v1119 = vunpack.c.l.b16 %v467
        %v1120 = vunpack.c.l.b16 %v468
        %v1121 = vunpack.c.l.b16 %v469
        %v1122 = vunpack.c.l.b16 %v470
        %v1123 = vunpack.c.l.b16 %v471
        %v1124 = vunpack.c.l.b16 %v472
        %v1125 = vunpack.c.l.b16 %v473
        %v1126 = vunpack.c.l.b16 %v474
        %v1127 = vunpack.c.l.b16 %v475
        %v1128 = vunpack.c.l.b16 %v476
        %v1129 = vunpack.c.l.b16 %v477
        %v1130 = vunpack.c.l.b16 %v478
        %v1131 = vunpack.c.l.b16 %v479
        %v1132 = vunpack.c.l.b16 %v480
        %v1133 = vunpack.c.l.b16 %v481
        %v1134 = vunpack.c.l.b16 %v482
        %v1135 = vunpack.c.l.b16 %v483
        %v1136 = vunpack.c.l.b16 %v484
        %v1137 = vunpack.c.l.b16 %v485
        %v1138 = vunpack.c.l.b16 %v486
        %v1139 = vunpack.c.l.b16 %v487
        %v1140 = vunpack.c.l.b16 %v488
        %v1141 = vunpack.c.l.b16 %v489
        %v1142 = vunpack.c.l.b16 %v490
        %v1143 = vunpack.c.l.b16 %v491
        %v1144 = vunpack.c.l.b16 %v492
        %v1145 = vunpack.c.l.b16 %v493
        %v1146 = vunpack.c.l.b16 %v494
        %v1147 = vunpack.c.l.b16 %v495
        %v1148 = vunpack.c.l.b16 %v496
        %v1149 = vunpack.c.l.b16 %v497
        %v1150 = vunpack.c.l.b16 %v498
        %v1151 = vunpack.c.l.b16 %v499
        %v1152 = vpack.c.b16 %v1081, %v1080
        %v1153 = vpack.c.b16 %v1083, %v1082
        %v1154 = vpack.c.b16 %v1085, %v1084
        %v1155 = vpack.c.b16 %v1087, %v1086
        %v1156 = vpack.c.b16 %v1089, %v1088
        %v1157 = vpack.c.b16 %v1091, %v1090
        %v1158 = vpack.c.b16 %v1093, %v1092
        %v1159 = vpack.c.b16 %v1095, %v1094
        %v1160 = vpack.c.b16 %v1097, %v1096
        %v1161 = vpack.c.b16 %v1099, %v1098
        %v1162 = vpack.c.b16 %v1101, %v1100
        %v1163 = vpack.c.b16 %v1103, %v1102
        %v1164 = vpack.c.b16 %v1105, %v1104
        %v1165 = vpack.c.b16 %v1107, %v1106
        %v1166 = vpack.c.b16 %v1109, %v1108
        %v1167 = vpack.c.b16 %v1111, %v1110
        %v1168 = vpack.c.b16 %v1113, %v1112
        %v1169 = vpack.c.b16 %v1115, %v1114
        %v1170 = vpack.c.b16 %v1117, %v1116
        %v1171 = vpack.c.b16 %v1119, %v1118
        %v1172 = vpack.c.b16 %v1121, %v1120
        %v1173 = vpack.c.b16 %v1123, %v1122
        %v1174 = vpack.c.b16 %v1125, %v1124
        %v1175 = vpack.c.b16 %v1127, %v1126
        %v1176 = vpack.c.b16 %v1129, %v1128
        %v1177 = vpack.c.b16 %v1131, %v1130
        %v1178 = vpack.c.b16 %v1133, %v1132
        %v1179 = vpack.c.b16 %v1135, %v1134
        %v1180 = vpack.c.b16 %v1137, %v1136
        %v1181 = vpack.c.b16 %v1139, %v1138
        %v1182 = vpack.c.b16 %v1141, %v1140
        %v1183 = vpack.c.b16 %v1143, %v1142
        %v1184 = vpack.c.b16 %v1145, %v1144
        %v1185 = vpack.c.b16 %v1147, %v1146
        %v1186 = vpack.c.b16 %v1149, %v1148
        %v1187 = vpack.c.b16 %v1151, %v1150
        %v1296 = vunpack.c.l.b16 %v504
        %v1297 = vunpack.c.l.b16 %v505
        %v1298 = vunpack.c.l.b16 %v506
        %v1299 = vunpack.c.l.b16 %v507
        %v1300 = vunpack.c.l.b16 %v508
        %v1301 = vunpack.c.l.b16 %v509
        %v1302 = vunpack.c.l.b16 %v510
        %v1303 = vunpack.c.l.b16 %v511
        %v1304 = vunpack.c.l.b16 %v512
        %v1305 = vunpack.c.l.b16 %v513
        %v1306 = vunpack.c.l.b16 %v514
        %v1307 = vunpack.c.l.b16 %v515
        %v1308 = vunpack.c.l.b16 %v516
        %v1309 = vunpack.c.l.b16 %v517
        %v1310 = vunpack.c.l.b16 %v518
        %v1311 = vunpack.c.l.b16 %v519
        %v1312 = vunpack.c.l.b16 %v520
        %v1313 = vunpack.c.l.b16 %v521
        %v1314 = vunpack.c.l.b16 %v522
        %v1315 = vunpack.c.l.b16 %v523
        %v1316 = vunpack.c.l.b16 %v524
        %v1317 = vunpack.c.l.b16 %v525
        %v1318 = vunpack.c.l.b16 %v526
        %v1319 = vunpack.c.l.b16 %v527
        %v1320 = vunpack.c.l.b16 %v528
        %v1321 = vunpack.c.l.b16 %v529
        %v1322 = vunpack.c.l.b16 %v530
        %v1323 = vunpack.c.l.b16 %v531
        %v1324 = vunpack.c.l.b16 %v532
        %v1325 = vunpack.c.l.b16 %v533
        %v1326 = vunpack.c.l.b16 %v534
        %v1327 = vunpack.c.l.b16 %v535
        %v1328 = vunpack.c.l.b16 %v536
        %v1329 = vunpack.c.l.b16 %v537
        %v1330 = vunpack.c.l.b16 %v538
        %v1331 = vunpack.c.l.b16 %v539
        %v1332 = vunpack.c.l.b16 %v540
        %v1333 = vunpack.c.l.b16 %v541
        %v1334 = vunpack.c.l.b16 %v542
        %v1335 = vunpack.c.l.b16 %v543
        %v1336 = vunpack.c.l.b16 %v544
        %v1337 = vunpack.c.l.b16 %v545
        %v1338 = vunpack.c.l.b16 %v546
        %v1339 = vunpack.c.l.b16 %v547
        %v1340 = vunpack.c.l.b16 %v548
        %v1341 = vunpack.c.l.b16 %v549
        %v1342 = vunpack.c.l.b16 %v550
        %v1343 = vunpack.c.l.b16 %v551
        %v1344 = vunpack.c.l.b16 %v552
        %v1345 = vunpack.c.l.b16 %v553
        %v1346 = vunpack.c.l.b16 %v554
        %v1347 = vunpack.c.l.b16 %v555
        %v1348 = vunpack.c.l.b16 %v556
        %v1349 = vunpack.c.l.b16 %v557
        %v1350 = vunpack.c.l.b16 %v558
        %v1351 = vunpack.c.l.b16 %v559
        %v1352 = vunpack.c.l.b16 %v560
        %v1353 = vunpack.c.l.b16 %v561
        %v1354 = vunpack.c.l.b16 %v562
        %v1355 = vunpack.c.l.b16 %v563
        %v1356 = vunpack.c.l.b16 %v564
        %v1357 = vunpack.c.l.b16 %v565
        %v1358 = vunpack.c.l.b16 %v566
        %v1359 = vunpack.c.l.b16 %v567
        %v1360 = vunpack.c.l.b16 %v568
        %v1361 = vunpack.c.l.b16 %v569
        %v1362 = vunpack.c.l.b16 %v570
        %v1363 = vunpack.c.l.b16 %v571
        %v1364 = vunpack.c.l.b16 %v572
        %v1365 = vunpack.c.l.b16 %v573
        %v1366 = vunpack.c.l.b16 %v574
        %v1367 = vunpack.c.l.b16 %v575
        %v1368 = vpack.c.b16 %v1297, %v1296
        %v1369 = vpack.c.b16 %v1299, %v1298
        %v1370 = vpack.c.b16 %v1301, %v1300
        %v1371 = vpack.c.b16 %v1303, %v1302
        %v1372 = vpack.c.b16 %v1305, %v1304
        %v1373 = vpack.c.b16 %v1307, %v1306
        %v1374 = vpack.c.b16 %v1309, %v1308
        %v1375 = vpack.c.b16 %v1311, %v1310
        %v1376 = vpack.c.b16 %v1313, %v1312
        %v1377 = vpack.c.b16 %v1315, %v1314
        %v1378 = vpack.c.b16 %v1317, %v1316
        %v1379 = vpack.c.b16 %v1319, %v1318
        %v1380 = vpack.c.b16 %v1321, %v1320
        %v1381 = vpack.c.b16 %v1323, %v1322
        %v1382 = vpack.c.b16 %v1325, %v1324
        %v1383 = vpack.c.b16 %v1327, %v1326
        %v1384 = vpack.c.b16 %v1329, %v1328
        %v1385 = vpack.c.b16 %v1331, %v1330
        %v1386 = vpack.c.b16 %v1333, %v1332
        %v1387 = vpack.c.b16 %v1335, %v1334
        %v1388 = vpack.c.b16 %v1337, %v1336
        %v1389 = vpack.c.b16 %v1339, %v1338
        %v1390 = vpack.c.b16 %v1341, %v1340
        %v1391 = vpack.c.b16 %v1343, %v1342
        %v1392 = vpack.c.b16 %v1345, %v1344
        %v1393 = vpack.c.b16 %v1347, %v1346
        %v1394 = vpack.c.b16 %v1349, %v1348
        %v1395 = vpack.c.b16 %v1351, %v1350
        %v1396 = vpack.c.b16 %v1353, %v1352
        %v1397 = vpack.c.b16 %v1355, %v1354
        %v1398 = vpack.c.b16 %v1357, %v1356
        %v1399 = vpack.c.b16 %v1359, %v1358
        %v1400 = vpack.c.b16 %v1361, %v1360
        %v1401 = vpack.c.b16 %v1363, %v1362
        %v1402 = vpack.c.b16 %v1365, %v1364
        %v1403 = vpack.c.b16 %v1367, %v1366
        %v1440 = vld [vmem:[#allocation7] sm:$0xf]
        %v1441 = vld [vmem:[#allocation7 + $0x4] sm:$0xf]
        %v1442 = vld [vmem:[#allocation7 + $0x8] sm:$0xf]
        %v1443 = vld [vmem:[#allocation7 + $0xc] sm:$0xf]
        %v1444 = vld [vmem:[#allocation7 + $0x10] sm:$0xf]
        %v1445 = vld [vmem:[#allocation7 + $0x14] sm:$0xf]
        %v1446 = vld [vmem:[#allocation7 + $0x18] sm:$0xf]
        %v1447 = vld [vmem:[#allocation7 + $0x1c] sm:$0xf]
        %v1448 = vld [vmem:[#allocation7 + $0x20] sm:$0xf]
        %v1449 = vld [vmem:[#allocation7 + $0x24] sm:$0xf]
        %v1450 = vld [vmem:[#allocation7 + $0x28] sm:$0xf]
        %v1451 = vld [vmem:[#allocation7 + $0x2c] sm:$0xf]
        %v1452 = vld [vmem:[#allocation7 + $0x30] sm:$0xf]
        %v1453 = vld [vmem:[#allocation7 + $0x34] sm:$0xf]
        %v1454 = vld [vmem:[#allocation7 + $0x38] sm:$0xf]
        %v1455 = vld [vmem:[#allocation7 + $0x3c] sm:$0xf]
        %v1456 = vld [vmem:[#allocation7 + $0x40] sm:$0xf]
        %v1457 = vld [vmem:[#allocation7 + $0x44] sm:$0xf]
        %v1458 = vld [vmem:[#allocation7 + $0x48] sm:$0xf]
        %v1459 = vld [vmem:[#allocation7 + $0x4c] sm:$0xf]
        %v1460 = vld [vmem:[#allocation7 + $0x50] sm:$0xf]
        %v1461 = vld [vmem:[#allocation7 + $0x54] sm:$0xf]
        %v1462 = vld [vmem:[#allocation7 + $0x58] sm:$0xf]
        %v1463 = vld [vmem:[#allocation7 + $0x5c] sm:$0xf]
        %v1464 = vld [vmem:[#allocation7 + $0x60] sm:$0xf]
        %v1465 = vld [vmem:[#allocation7 + $0x64] sm:$0xf]
        %v1466 = vld [vmem:[#allocation7 + $0x68] sm:$0xf]
        %v1467 = vld [vmem:[#allocation7 + $0x6c] sm:$0xf]
        %v1468 = vld [vmem:[#allocation7 + $0x70] sm:$0xf]
        %v1469 = vld [vmem:[#allocation7 + $0x74] sm:$0xf]
        %v1470 = vld [vmem:[#allocation7 + $0x78] sm:$0xf]
        %v1471 = vld [vmem:[#allocation7 + $0x7c] sm:$0xf]
        %v1472 = vld [vmem:[#allocation7 + $0x80] sm:$0xf]
        %v1473 = vld [vmem:[#allocation7 + $0x84] sm:$0xf]
        %v1474 = vld [vmem:[#allocation7 + $0x88] sm:$0xf]
        %v1475 = vld [vmem:[#allocation7 + $0x8c] sm:$0xf]
        %v1476 = vld [vmem:[#allocation7 + $0x90] sm:$0xf]
        %v1477 = vld [vmem:[#allocation7 + $0x94] sm:$0xf]
        %v1478 = vld [vmem:[#allocation7 + $0x98] sm:$0xf]
        %v1479 = vld [vmem:[#allocation7 + $0x9c] sm:$0xf]
        %v1480 = vld [vmem:[#allocation7 + $0xa0] sm:$0xf]
        %v1481 = vld [vmem:[#allocation7 + $0xa4] sm:$0xf]
        %v1482 = vld [vmem:[#allocation7 + $0xa8] sm:$0xf]
        %v1483 = vld [vmem:[#allocation7 + $0xac] sm:$0xf]
        %v1484 = vld [vmem:[#allocation7 + $0xb0] sm:$0xf]
        %v1485 = vld [vmem:[#allocation7 + $0xb4] sm:$0xf]
        %v1486 = vld [vmem:[#allocation7 + $0xb8] sm:$0xf]
        %v1487 = vld [vmem:[#allocation7 + $0xbc] sm:$0xf]
        %v1488 = vld [vmem:[#allocation7 + $0xc0] sm:$0xf]
        %v1489 = vld [vmem:[#allocation7 + $0xc4] sm:$0xf]
        %v1490 = vld [vmem:[#allocation7 + $0xc8] sm:$0xf]
        %v1491 = vld [vmem:[#allocation7 + $0xcc] sm:$0xf]
        %v1492 = vld [vmem:[#allocation7 + $0xd0] sm:$0xf]
        %v1493 = vld [vmem:[#allocation7 + $0xd4] sm:$0xf]
        %v1494 = vld [vmem:[#allocation7 + $0xd8] sm:$0xf]
        %v1495 = vld [vmem:[#allocation7 + $0xdc] sm:$0xf]
        %v1496 = vld [vmem:[#allocation7 + $0xe0] sm:$0xf]
        %v1497 = vld [vmem:[#allocation7 + $0xe4] sm:$0xf]
        %v1498 = vld [vmem:[#allocation7 + $0xe8] sm:$0xf]
        %v1499 = vld [vmem:[#allocation7 + $0xec] sm:$0xf]
        %v1500 = vld [vmem:[#allocation7 + $0xf0] sm:$0xf]
        %v1501 = vld [vmem:[#allocation7 + $0xf4] sm:$0xf]
        %v1502 = vld [vmem:[#allocation7 + $0xf8] sm:$0xf]
        %v1503 = vld [vmem:[#allocation7 + $0xfc] sm:$0xf]
        %v1568 = vunpack.c.l.b16 %v1440
        %v1569 = vunpack.c.l.b16 %v1441
        %v1570 = vunpack.c.l.b16 %v1442
        %v1571 = vunpack.c.l.b16 %v1443
        %v1572 = vunpack.c.l.b16 %v1444
        %v1573 = vunpack.c.l.b16 %v1445
        %v1574 = vunpack.c.l.b16 %v1446
        %v1575 = vunpack.c.l.b16 %v1447
        %v1576 = vunpack.c.l.b16 %v1448
        %v1577 = vunpack.c.l.b16 %v1449
        %v1578 = vunpack.c.l.b16 %v1450
        %v1579 = vunpack.c.l.b16 %v1451
        %v1580 = vunpack.c.l.b16 %v1452
        %v1581 = vunpack.c.l.b16 %v1453
        %v1582 = vunpack.c.l.b16 %v1454
        %v1583 = vunpack.c.l.b16 %v1455
        %v1584 = vunpack.c.l.b16 %v1456
        %v1585 = vunpack.c.l.b16 %v1457
        %v1586 = vunpack.c.l.b16 %v1458
        %v1587 = vunpack.c.l.b16 %v1459
        %v1588 = vunpack.c.l.b16 %v1460
        %v1589 = vunpack.c.l.b16 %v1461
        %v1590 = vunpack.c.l.b16 %v1462
        %v1591 = vunpack.c.l.b16 %v1463
        %v1592 = vunpack.c.l.b16 %v1464
        %v1593 = vunpack.c.l.b16 %v1465
        %v1594 = vunpack.c.l.b16 %v1466
        %v1595 = vunpack.c.l.b16 %v1467
        %v1596 = vunpack.c.l.b16 %v1468
        %v1597 = vunpack.c.l.b16 %v1469
        %v1598 = vunpack.c.l.b16 %v1470
        %v1599 = vunpack.c.l.b16 %v1471
        %v1600 = vunpack.c.l.b16 %v1472
        %v1601 = vunpack.c.l.b16 %v1473
        %v1602 = vunpack.c.l.b16 %v1474
        %v1603 = vunpack.c.l.b16 %v1475
        %v1604 = vunpack.c.l.b16 %v1476
        %v1605 = vunpack.c.l.b16 %v1477
        %v1606 = vunpack.c.l.b16 %v1478
        %v1607 = vunpack.c.l.b16 %v1479
        %v1608 = vunpack.c.l.b16 %v1480
        %v1609 = vunpack.c.l.b16 %v1481
        %v1610 = vunpack.c.l.b16 %v1482
        %v1611 = vunpack.c.l.b16 %v1483
        %v1612 = vunpack.c.l.b16 %v1484
        %v1613 = vunpack.c.l.b16 %v1485
        %v1614 = vunpack.c.l.b16 %v1486
        %v1615 = vunpack.c.l.b16 %v1487
        %v1616 = vunpack.c.l.b16 %v1488
        %v1617 = vunpack.c.l.b16 %v1489
        %v1618 = vunpack.c.l.b16 %v1490
        %v1619 = vunpack.c.l.b16 %v1491
        %v1620 = vunpack.c.l.b16 %v1492
        %v1621 = vunpack.c.l.b16 %v1493
        %v1622 = vunpack.c.l.b16 %v1494
        %v1623 = vunpack.c.l.b16 %v1495
        %v1624 = vunpack.c.l.b16 %v1496
        %v1625 = vunpack.c.l.b16 %v1497
        %v1626 = vunpack.c.l.b16 %v1498
        %v1627 = vunpack.c.l.b16 %v1499
        %v1628 = vunpack.c.l.b16 %v1500
        %v1629 = vunpack.c.l.b16 %v1501
        %v1630 = vunpack.c.l.b16 %v1502
        %v1631 = vunpack.c.l.b16 %v1503
        %v1632 = vpack.c.b16 %v1569, %v1568
        %v1633 = vpack.c.b16 %v1571, %v1570
        %v1634 = vpack.c.b16 %v1573, %v1572
        %v1635 = vpack.c.b16 %v1575, %v1574
        %v1636 = vpack.c.b16 %v1577, %v1576
        %v1637 = vpack.c.b16 %v1579, %v1578
        %v1638 = vpack.c.b16 %v1581, %v1580
        %v1639 = vpack.c.b16 %v1583, %v1582
        %v1640 = vpack.c.b16 %v1585, %v1584
        %v1641 = vpack.c.b16 %v1587, %v1586
        %v1642 = vpack.c.b16 %v1589, %v1588
        %v1643 = vpack.c.b16 %v1591, %v1590
        %v1644 = vpack.c.b16 %v1593, %v1592
        %v1645 = vpack.c.b16 %v1595, %v1594
        %v1646 = vpack.c.b16 %v1597, %v1596
        %v1647 = vpack.c.b16 %v1599, %v1598
        %v1648 = vpack.c.b16 %v1601, %v1600
        %v1649 = vpack.c.b16 %v1603, %v1602
        %v1650 = vpack.c.b16 %v1605, %v1604
        %v1651 = vpack.c.b16 %v1607, %v1606
        %v1652 = vpack.c.b16 %v1609, %v1608
        %v1653 = vpack.c.b16 %v1611, %v1610
        %v1654 = vpack.c.b16 %v1613, %v1612
        %v1655 = vpack.c.b16 %v1615, %v1614
        %v1656 = vpack.c.b16 %v1617, %v1616
        %v1657 = vpack.c.b16 %v1619, %v1618
        %v1658 = vpack.c.b16 %v1621, %v1620
        %v1659 = vpack.c.b16 %v1623, %v1622
        %v1660 = vpack.c.b16 %v1625, %v1624
        %v1661 = vpack.c.b16 %v1627, %v1626
        %v1662 = vpack.c.b16 %v1629, %v1628
        %v1663 = vpack.c.b16 %v1631, %v1630
        %1696 = vmatpush.bf16.msra.mxu0 %v1639
        %1697 = vmatpush.bf16.msra.mxu0 %v1638
        %1698 = vmatpush.bf16.msra.mxu0 %v1637
        %1699 = vmatpush.bf16.msra.mxu0 %v1636
        %1700 = vmatpush.bf16.msra.mxu0 %v1635
        %1701 = vmatpush.bf16.msra.mxu0 %v1634
        %1702 = vmatpush.bf16.msra.mxu0 %v1633
        %1703 = vmatpush.bf16.msra.mxu0 %v1632
        %1704 = vmatmul.bf16.gmra.mxu0 %v720
        %v1705 = vpop.f32.mrf.mxu0
        %v1706 = vadd.f32 0.0, %v1705
        %v1707 = vpop.f32.mrf.mxu0
        %v1708 = vadd.f32 0.0, %v1707
        %1709 = vmatmul.bf16.gmra.mxu0 %v721
        %v1710 = vpop.f32.mrf.mxu0
        %v1711 = vadd.f32 0.0, %v1710
        %v1712 = vpop.f32.mrf.mxu0
        %v1713 = vadd.f32 0.0, %v1712
        %1714 = vmatmul.bf16.gmra.mxu0 %v722
        %v1715 = vpop.f32.mrf.mxu0
        %v1716 = vadd.f32 0.0, %v1715
        %v1717 = vpop.f32.mrf.mxu0
        %v1718 = vadd.f32 0.0, %v1717
        %1719 = vmatmul.bf16.gmra.mxu0 %v723
        %v1720 = vpop.f32.mrf.mxu0
        %v1721 = vadd.f32 0.0, %v1720
        %v1722 = vpop.f32.mrf.mxu0
        %v1723 = vadd.f32 0.0, %v1722
        %1724 = vmatmul.bf16.gmra.mxu0 %v724
        %v1725 = vpop.f32.mrf.mxu0
        %v1726 = vadd.f32 0.0, %v1725
        %v1727 = vpop.f32.mrf.mxu0
        %v1728 = vadd.f32 0.0, %v1727
        %1729 = vmatmul.bf16.gmra.mxu0 %v725
        %v1730 = vpop.f32.mrf.mxu0
        %v1731 = vadd.f32 0.0, %v1730
        %v1732 = vpop.f32.mrf.mxu0
        %v1733 = vadd.f32 0.0, %v1732
        %1734 = vmatmul.bf16.gmra.mxu0 %v726
        %v1735 = vpop.f32.mrf.mxu0
        %v1736 = vadd.f32 0.0, %v1735
        %v1737 = vpop.f32.mrf.mxu0
        %v1738 = vadd.f32 0.0, %v1737
        %1739 = vmatmul.bf16.gmra.mxu0 %v727
        %v1740 = vpop.f32.mrf.mxu0
        %v1741 = vadd.f32 0.0, %v1740
        %v1742 = vpop.f32.mrf.mxu0
        %v1743 = vadd.f32 0.0, %v1742
        %1744 = vmatmul.bf16.gmra.mxu0 %v728
        %v1745 = vpop.f32.mrf.mxu0
        %v1746 = vadd.f32 0.0, %v1745
        %v1747 = vpop.f32.mrf.mxu0
        %v1748 = vadd.f32 0.0, %v1747
        %1749 = vmatmul.bf16.gmra.mxu0 %v729
        %v1750 = vpop.f32.mrf.mxu0
        %v1751 = vadd.f32 0.0, %v1750
        %v1752 = vpop.f32.mrf.mxu0
        %v1753 = vadd.f32 0.0, %v1752
        %1754 = vmatmul.bf16.gmra.mxu0 %v730
        %v1755 = vpop.f32.mrf.mxu0
        %v1756 = vadd.f32 0.0, %v1755
        %v1757 = vpop.f32.mrf.mxu0
        %v1758 = vadd.f32 0.0, %v1757
        %1759 = vmatmul.bf16.gmra.mxu0 %v731
        %v1760 = vpop.f32.mrf.mxu0
        %v1761 = vadd.f32 0.0, %v1760
        %v1762 = vpop.f32.mrf.mxu0
        %v1763 = vadd.f32 0.0, %v1762
        %1764 = vmatmul.bf16.gmra.mxu0 %v732
        %v1765 = vpop.f32.mrf.mxu0
        %v1766 = vadd.f32 0.0, %v1765
        %v1767 = vpop.f32.mrf.mxu0
        %v1768 = vadd.f32 0.0, %v1767
        %1769 = vmatmul.bf16.gmra.mxu0 %v733
        %v1770 = vpop.f32.mrf.mxu0
        %v1771 = vadd.f32 0.0, %v1770
        %v1772 = vpop.f32.mrf.mxu0
        %v1773 = vadd.f32 0.0, %v1772
        %1774 = vmatmul.bf16.gmra.mxu0 %v734
        %v1775 = vpop.f32.mrf.mxu0
        %v1776 = vadd.f32 0.0, %v1775
        %v1777 = vpop.f32.mrf.mxu0
        %v1778 = vadd.f32 0.0, %v1777
        %1779 = vmatmul.bf16.gmra.mxu0 %v735
        %v1780 = vpop.f32.mrf.mxu0
        %v1781 = vadd.f32 0.0, %v1780
        %v1782 = vpop.f32.mrf.mxu0
        %v1783 = vadd.f32 0.0, %v1782
        %1784 = vmatmul.bf16.gmra.mxu0 %v736
        %v1785 = vpop.f32.mrf.mxu0
        %v1786 = vadd.f32 0.0, %v1785
        %v1787 = vpop.f32.mrf.mxu0
        %v1788 = vadd.f32 0.0, %v1787
        %1789 = vmatmul.bf16.gmra.mxu0 %v737
        %v1790 = vpop.f32.mrf.mxu0
        %v1791 = vadd.f32 0.0, %v1790
        %v1792 = vpop.f32.mrf.mxu0
        %v1793 = vadd.f32 0.0, %v1792
        %1794 = vmatmul.bf16.gmra.mxu0 %v738
        %v1795 = vpop.f32.mrf.mxu0
        %v1796 = vadd.f32 0.0, %v1795
        %v1797 = vpop.f32.mrf.mxu0
        %v1798 = vadd.f32 0.0, %v1797
        %1799 = vmatmul.bf16.gmra.mxu0 %v739
        %v1800 = vpop.f32.mrf.mxu0
        %v1801 = vadd.f32 0.0, %v1800
        %v1802 = vpop.f32.mrf.mxu0
        %v1803 = vadd.f32 0.0, %v1802
        %1804 = vmatmul.bf16.gmra.mxu0 %v740
        %v1805 = vpop.f32.mrf.mxu0
        %v1806 = vadd.f32 0.0, %v1805
        %v1807 = vpop.f32.mrf.mxu0
        %v1808 = vadd.f32 0.0, %v1807
        %1809 = vmatmul.bf16.gmra.mxu0 %v741
        %v1810 = vpop.f32.mrf.mxu0
        %v1811 = vadd.f32 0.0, %v1810
        %v1812 = vpop.f32.mrf.mxu0
        %v1813 = vadd.f32 0.0, %v1812
        %1814 = vmatmul.bf16.gmra.mxu0 %v742
        %v1815 = vpop.f32.mrf.mxu0
        %v1816 = vadd.f32 0.0, %v1815
        %v1817 = vpop.f32.mrf.mxu0
        %v1818 = vadd.f32 0.0, %v1817
        %1819 = vmatmul.bf16.gmra.mxu0 %v743
        %v1820 = vpop.f32.mrf.mxu0
        %v1821 = vadd.f32 0.0, %v1820
        %v1822 = vpop.f32.mrf.mxu0
        %v1823 = vadd.f32 0.0, %v1822
        %1824 = vmatmul.bf16.gmra.mxu0 %v744
        %v1825 = vpop.f32.mrf.mxu0
        %v1826 = vadd.f32 0.0, %v1825
        %v1827 = vpop.f32.mrf.mxu0
        %v1828 = vadd.f32 0.0, %v1827
        %1829 = vmatmul.bf16.gmra.mxu0 %v745
        %v1830 = vpop.f32.mrf.mxu0
        %v1831 = vadd.f32 0.0, %v1830
        %v1832 = vpop.f32.mrf.mxu0
        %v1833 = vadd.f32 0.0, %v1832
        %1834 = vmatmul.bf16.gmra.mxu0 %v746
        %v1835 = vpop.f32.mrf.mxu0
        %v1836 = vadd.f32 0.0, %v1835
        %v1837 = vpop.f32.mrf.mxu0
        %v1838 = vadd.f32 0.0, %v1837
        %1839 = vmatmul.bf16.gmra.mxu0 %v747
        %v1840 = vpop.f32.mrf.mxu0
        %v1841 = vadd.f32 0.0, %v1840
        %v1842 = vpop.f32.mrf.mxu0
        %v1843 = vadd.f32 0.0, %v1842
        %1844 = vmatmul.bf16.gmra.mxu0 %v748
        %v1845 = vpop.f32.mrf.mxu0
        %v1846 = vadd.f32 0.0, %v1845
        %v1847 = vpop.f32.mrf.mxu0
        %v1848 = vadd.f32 0.0, %v1847
        %1849 = vmatmul.bf16.gmra.mxu0 %v749
        %v1850 = vpop.f32.mrf.mxu0
        %v1851 = vadd.f32 0.0, %v1850
        %v1852 = vpop.f32.mrf.mxu0
        %v1853 = vadd.f32 0.0, %v1852
        %1854 = vmatmul.bf16.gmra.mxu0 %v750
        %v1855 = vpop.f32.mrf.mxu0
        %v1856 = vadd.f32 0.0, %v1855
        %v1857 = vpop.f32.mrf.mxu0
        %v1858 = vadd.f32 0.0, %v1857
        %1859 = vmatmul.bf16.gmra.mxu0 %v751
        %v1860 = vpop.f32.mrf.mxu0
        %v1861 = vadd.f32 0.0, %v1860
        %v1862 = vpop.f32.mrf.mxu0
        %v1863 = vadd.f32 0.0, %v1862
        %1864 = vmatmul.bf16.gmra.mxu0 %v752
        %v1865 = vpop.f32.mrf.mxu0
        %v1866 = vadd.f32 0.0, %v1865
        %v1867 = vpop.f32.mrf.mxu0
        %v1868 = vadd.f32 0.0, %v1867
        %1869 = vmatmul.bf16.gmra.mxu0 %v753
        %v1870 = vpop.f32.mrf.mxu0
        %v1871 = vadd.f32 0.0, %v1870
        %v1872 = vpop.f32.mrf.mxu0
        %v1873 = vadd.f32 0.0, %v1872
        %1874 = vmatmul.bf16.gmra.mxu0 %v754
        %v1875 = vpop.f32.mrf.mxu0
        %v1876 = vadd.f32 0.0, %v1875
        %v1877 = vpop.f32.mrf.mxu0
        %v1878 = vadd.f32 0.0, %v1877
        %1879 = vmatmul.bf16.gmra.mxu0 %v755
        %v1880 = vpop.f32.mrf.mxu0
        %v1881 = vadd.f32 0.0, %v1880
        %v1882 = vpop.f32.mrf.mxu0
        %v1883 = vadd.f32 0.0, %v1882
        %1884 = vdwg.mxu0
        %1885 = vmatpush.bf16.msra.mxu0 %v1647
        %1886 = vmatpush.bf16.msra.mxu0 %v1646
        %1887 = vmatpush.bf16.msra.mxu0 %v1645
        %1888 = vmatpush.bf16.msra.mxu0 %v1644
        %1889 = vmatpush.bf16.msra.mxu0 %v1643
        %1890 = vmatpush.bf16.msra.mxu0 %v1642
        %1891 = vmatpush.bf16.msra.mxu0 %v1641
        %1892 = vmatpush.bf16.msra.mxu0 %v1640
        %1893 = vmatmul.bf16.gmra.mxu0 %v936
        %v1894 = vpop.f32.mrf.mxu0
        %v1895 = vadd.f32 %v1706, %v1894
        %v1896 = vpop.f32.mrf.mxu0
        %v1897 = vadd.f32 %v1708, %v1896
        %1898 = vmatmul.bf16.gmra.mxu0 %v937
        %v1899 = vpop.f32.mrf.mxu0
        %v1900 = vadd.f32 %v1711, %v1899
        %v1901 = vpop.f32.mrf.mxu0
        %v1902 = vadd.f32 %v1713, %v1901
        %1903 = vmatmul.bf16.gmra.mxu0 %v938
        %v1904 = vpop.f32.mrf.mxu0
        %v1905 = vadd.f32 %v1716, %v1904
        %v1906 = vpop.f32.mrf.mxu0
        %v1907 = vadd.f32 %v1718, %v1906
        %1908 = vmatmul.bf16.gmra.mxu0 %v939
        %v1909 = vpop.f32.mrf.mxu0
        %v1910 = vadd.f32 %v1721, %v1909
        %v1911 = vpop.f32.mrf.mxu0
        %v1912 = vadd.f32 %v1723, %v1911
        %1913 = vmatmul.bf16.gmra.mxu0 %v940
        %v1914 = vpop.f32.mrf.mxu0
        %v1915 = vadd.f32 %v1726, %v1914
        %v1916 = vpop.f32.mrf.mxu0
        %v1917 = vadd.f32 %v1728, %v1916
        %1918 = vmatmul.bf16.gmra.mxu0 %v941
        %v1919 = vpop.f32.mrf.mxu0
        %v1920 = vadd.f32 %v1731, %v1919
        %v1921 = vpop.f32.mrf.mxu0
        %v1922 = vadd.f32 %v1733, %v1921
        %1923 = vmatmul.bf16.gmra.mxu0 %v942
        %v1924 = vpop.f32.mrf.mxu0
        %v1925 = vadd.f32 %v1736, %v1924
        %v1926 = vpop.f32.mrf.mxu0
        %v1927 = vadd.f32 %v1738, %v1926
        %1928 = vmatmul.bf16.gmra.mxu0 %v943
        %v1929 = vpop.f32.mrf.mxu0
        %v1930 = vadd.f32 %v1741, %v1929
        %v1931 = vpop.f32.mrf.mxu0
        %v1932 = vadd.f32 %v1743, %v1931
        %1933 = vmatmul.bf16.gmra.mxu0 %v944
        %v1934 = vpop.f32.mrf.mxu0
        %v1935 = vadd.f32 %v1746, %v1934
        %v1936 = vpop.f32.mrf.mxu0
        %v1937 = vadd.f32 %v1748, %v1936
        %1938 = vmatmul.bf16.gmra.mxu0 %v945
        %v1939 = vpop.f32.mrf.mxu0
        %v1940 = vadd.f32 %v1751, %v1939
        %v1941 = vpop.f32.mrf.mxu0
        %v1942 = vadd.f32 %v1753, %v1941
        %1943 = vmatmul.bf16.gmra.mxu0 %v946
        %v1944 = vpop.f32.mrf.mxu0
        %v1945 = vadd.f32 %v1756, %v1944
        %v1946 = vpop.f32.mrf.mxu0
        %v1947 = vadd.f32 %v1758, %v1946
        %1948 = vmatmul.bf16.gmra.mxu0 %v947
        %v1949 = vpop.f32.mrf.mxu0
        %v1950 = vadd.f32 %v1761, %v1949
        %v1951 = vpop.f32.mrf.mxu0
        %v1952 = vadd.f32 %v1763, %v1951
        %1953 = vmatmul.bf16.gmra.mxu0 %v948
        %v1954 = vpop.f32.mrf.mxu0
        %v1955 = vadd.f32 %v1766, %v1954
        %v1956 = vpop.f32.mrf.mxu0
        %v1957 = vadd.f32 %v1768, %v1956
        %1958 = vmatmul.bf16.gmra.mxu0 %v949
        %v1959 = vpop.f32.mrf.mxu0
        %v1960 = vadd.f32 %v1771, %v1959
        %v1961 = vpop.f32.mrf.mxu0
        %v1962 = vadd.f32 %v1773, %v1961
        %1963 = vmatmul.bf16.gmra.mxu0 %v950
        %v1964 = vpop.f32.mrf.mxu0
        %v1965 = vadd.f32 %v1776, %v1964
        %v1966 = vpop.f32.mrf.mxu0
        %v1967 = vadd.f32 %v1778, %v1966
        %1968 = vmatmul.bf16.gmra.mxu0 %v951
        %v1969 = vpop.f32.mrf.mxu0
        %v1970 = vadd.f32 %v1781, %v1969
        %v1971 = vpop.f32.mrf.mxu0
        %v1972 = vadd.f32 %v1783, %v1971
        %1973 = vmatmul.bf16.gmra.mxu0 %v952
        %v1974 = vpop.f32.mrf.mxu0
        %v1975 = vadd.f32 %v1786, %v1974
        %v1976 = vpop.f32.mrf.mxu0
        %v1977 = vadd.f32 %v1788, %v1976
        %1978 = vmatmul.bf16.gmra.mxu0 %v953
        %v1979 = vpop.f32.mrf.mxu0
        %v1980 = vadd.f32 %v1791, %v1979
        %v1981 = vpop.f32.mrf.mxu0
        %v1982 = vadd.f32 %v1793, %v1981
        %1983 = vmatmul.bf16.gmra.mxu0 %v954
        %v1984 = vpop.f32.mrf.mxu0
        %v1985 = vadd.f32 %v1796, %v1984
        %v1986 = vpop.f32.mrf.mxu0
        %v1987 = vadd.f32 %v1798, %v1986
        %1988 = vmatmul.bf16.gmra.mxu0 %v955
        %v1989 = vpop.f32.mrf.mxu0
        %v1990 = vadd.f32 %v1801, %v1989
        %v1991 = vpop.f32.mrf.mxu0
        %v1992 = vadd.f32 %v1803, %v1991
        %1993 = vmatmul.bf16.gmra.mxu0 %v956
        %v1994 = vpop.f32.mrf.mxu0
        %v1995 = vadd.f32 %v1806, %v1994
        %v1996 = vpop.f32.mrf.mxu0
        %v1997 = vadd.f32 %v1808, %v1996
        %1998 = vmatmul.bf16.gmra.mxu0 %v957
        %v1999 = vpop.f32.mrf.mxu0
        %v2000 = vadd.f32 %v1811, %v1999
        %v2001 = vpop.f32.mrf.mxu0
        %v2002 = vadd.f32 %v1813, %v2001
        %2003 = vmatmul.bf16.gmra.mxu0 %v958
        %v2004 = vpop.f32.mrf.mxu0
        %v2005 = vadd.f32 %v1816, %v2004
        %v2006 = vpop.f32.mrf.mxu0
        %v2007 = vadd.f32 %v1818, %v2006
        %2008 = vmatmul.bf16.gmra.mxu0 %v959
        %v2009 = vpop.f32.mrf.mxu0
        %v2010 = vadd.f32 %v1821, %v2009
        %v2011 = vpop.f32.mrf.mxu0
        %v2012 = vadd.f32 %v1823, %v2011
        %2013 = vmatmul.bf16.gmra.mxu0 %v960
        %v2014 = vpop.f32.mrf.mxu0
        %v2015 = vadd.f32 %v1826, %v2014
        %v2016 = vpop.f32.mrf.mxu0
        %v2017 = vadd.f32 %v1828, %v2016
        %2018 = vmatmul.bf16.gmra.mxu0 %v961
        %v2019 = vpop.f32.mrf.mxu0
        %v2020 = vadd.f32 %v1831, %v2019
        %v2021 = vpop.f32.mrf.mxu0
        %v2022 = vadd.f32 %v1833, %v2021
        %2023 = vmatmul.bf16.gmra.mxu0 %v962
        %v2024 = vpop.f32.mrf.mxu0
        %v2025 = vadd.f32 %v1836, %v2024
        %v2026 = vpop.f32.mrf.mxu0
        %v2027 = vadd.f32 %v1838, %v2026
        %2028 = vmatmul.bf16.gmra.mxu0 %v963
        %v2029 = vpop.f32.mrf.mxu0
        %v2030 = vadd.f32 %v1841, %v2029
        %v2031 = vpop.f32.mrf.mxu0
        %v2032 = vadd.f32 %v1843, %v2031
        %2033 = vmatmul.bf16.gmra.mxu0 %v964
        %v2034 = vpop.f32.mrf.mxu0
        %v2035 = vadd.f32 %v1846, %v2034
        %v2036 = vpop.f32.mrf.mxu0
        %v2037 = vadd.f32 %v1848, %v2036
        %2038 = vmatmul.bf16.gmra.mxu0 %v965
        %v2039 = vpop.f32.mrf.mxu0
        %v2040 = vadd.f32 %v1851, %v2039
        %v2041 = vpop.f32.mrf.mxu0
        %v2042 = vadd.f32 %v1853, %v2041
        %2043 = vmatmul.bf16.gmra.mxu0 %v966
        %v2044 = vpop.f32.mrf.mxu0
        %v2045 = vadd.f32 %v1856, %v2044
        %v2046 = vpop.f32.mrf.mxu0
        %v2047 = vadd.f32 %v1858, %v2046
        %2048 = vmatmul.bf16.gmra.mxu0 %v967
        %v2049 = vpop.f32.mrf.mxu0
        %v2050 = vadd.f32 %v1861, %v2049
        %v2051 = vpop.f32.mrf.mxu0
        %v2052 = vadd.f32 %v1863, %v2051
        %2053 = vmatmul.bf16.gmra.mxu0 %v968
        %v2054 = vpop.f32.mrf.mxu0
        %v2055 = vadd.f32 %v1866, %v2054
        %v2056 = vpop.f32.mrf.mxu0
        %v2057 = vadd.f32 %v1868, %v2056
        %2058 = vmatmul.bf16.gmra.mxu0 %v969
        %v2059 = vpop.f32.mrf.mxu0
        %v2060 = vadd.f32 %v1871, %v2059
        %v2061 = vpop.f32.mrf.mxu0
        %v2062 = vadd.f32 %v1873, %v2061
        %2063 = vmatmul.bf16.gmra.mxu0 %v970
        %v2064 = vpop.f32.mrf.mxu0
        %v2065 = vadd.f32 %v1876, %v2064
        %v2066 = vpop.f32.mrf.mxu0
        %v2067 = vadd.f32 %v1878, %v2066
        %2068 = vmatmul.bf16.gmra.mxu0 %v971
        %v2069 = vpop.f32.mrf.mxu0
        %v2070 = vadd.f32 %v1881, %v2069
        %v2071 = vpop.f32.mrf.mxu0
        %v2072 = vadd.f32 %v1883, %v2071
        %2073 = vdwg.mxu0
        %2074 = vmatpush.bf16.msra.mxu0 %v1655
        %2075 = vmatpush.bf16.msra.mxu0 %v1654
        %2076 = vmatpush.bf16.msra.mxu0 %v1653
        %2077 = vmatpush.bf16.msra.mxu0 %v1652
        %2078 = vmatpush.bf16.msra.mxu0 %v1651
        %2079 = vmatpush.bf16.msra.mxu0 %v1650
        %2080 = vmatpush.bf16.msra.mxu0 %v1649
        %2081 = vmatpush.bf16.msra.mxu0 %v1648
        %2082 = vmatmul.bf16.gmra.mxu0 %v1152
        %v2083 = vpop.f32.mrf.mxu0
        %v2084 = vadd.f32 %v1895, %v2083
        %v2085 = vpop.f32.mrf.mxu0
        %v2086 = vadd.f32 %v1897, %v2085
        %2087 = vmatmul.bf16.gmra.mxu0 %v1153
        %v2088 = vpop.f32.mrf.mxu0
        %v2089 = vadd.f32 %v1900, %v2088
        %v2090 = vpop.f32.mrf.mxu0
        %v2091 = vadd.f32 %v1902, %v2090
        %2092 = vmatmul.bf16.gmra.mxu0 %v1154
        %v2093 = vpop.f32.mrf.mxu0
        %v2094 = vadd.f32 %v1905, %v2093
        %v2095 = vpop.f32.mrf.mxu0
        %v2096 = vadd.f32 %v1907, %v2095
        %2097 = vmatmul.bf16.gmra.mxu0 %v1155
        %v2098 = vpop.f32.mrf.mxu0
        %v2099 = vadd.f32 %v1910, %v2098
        %v2100 = vpop.f32.mrf.mxu0
        %v2101 = vadd.f32 %v1912, %v2100
        %2102 = vmatmul.bf16.gmra.mxu0 %v1156
        %v2103 = vpop.f32.mrf.mxu0
        %v2104 = vadd.f32 %v1915, %v2103
        %v2105 = vpop.f32.mrf.mxu0
        %v2106 = vadd.f32 %v1917, %v2105
        %2107 = vmatmul.bf16.gmra.mxu0 %v1157
        %v2108 = vpop.f32.mrf.mxu0
        %v2109 = vadd.f32 %v1920, %v2108
        %v2110 = vpop.f32.mrf.mxu0
        %v2111 = vadd.f32 %v1922, %v2110
        %2112 = vmatmul.bf16.gmra.mxu0 %v1158
        %v2113 = vpop.f32.mrf.mxu0
        %v2114 = vadd.f32 %v1925, %v2113
        %v2115 = vpop.f32.mrf.mxu0
        %v2116 = vadd.f32 %v1927, %v2115
        %2117 = vmatmul.bf16.gmra.mxu0 %v1159
        %v2118 = vpop.f32.mrf.mxu0
        %v2119 = vadd.f32 %v1930, %v2118
        %v2120 = vpop.f32.mrf.mxu0
        %v2121 = vadd.f32 %v1932, %v2120
        %2122 = vmatmul.bf16.gmra.mxu0 %v1160
        %v2123 = vpop.f32.mrf.mxu0
        %v2124 = vadd.f32 %v1935, %v2123
        %v2125 = vpop.f32.mrf.mxu0
        %v2126 = vadd.f32 %v1937, %v2125
        %2127 = vmatmul.bf16.gmra.mxu0 %v1161
        %v2128 = vpop.f32.mrf.mxu0
        %v2129 = vadd.f32 %v1940, %v2128
        %v2130 = vpop.f32.mrf.mxu0
        %v2131 = vadd.f32 %v1942, %v2130
        %2132 = vmatmul.bf16.gmra.mxu0 %v1162
        %v2133 = vpop.f32.mrf.mxu0
        %v2134 = vadd.f32 %v1945, %v2133
        %v2135 = vpop.f32.mrf.mxu0
        %v2136 = vadd.f32 %v1947, %v2135
        %2137 = vmatmul.bf16.gmra.mxu0 %v1163
        %v2138 = vpop.f32.mrf.mxu0
        %v2139 = vadd.f32 %v1950, %v2138
        %v2140 = vpop.f32.mrf.mxu0
        %v2141 = vadd.f32 %v1952, %v2140
        %2142 = vmatmul.bf16.gmra.mxu0 %v1164
        %v2143 = vpop.f32.mrf.mxu0
        %v2144 = vadd.f32 %v1955, %v2143
        %v2145 = vpop.f32.mrf.mxu0
        %v2146 = vadd.f32 %v1957, %v2145
        %2147 = vmatmul.bf16.gmra.mxu0 %v1165
        %v2148 = vpop.f32.mrf.mxu0
        %v2149 = vadd.f32 %v1960, %v2148
        %v2150 = vpop.f32.mrf.mxu0
        %v2151 = vadd.f32 %v1962, %v2150
        %2152 = vmatmul.bf16.gmra.mxu0 %v1166
        %v2153 = vpop.f32.mrf.mxu0
        %v2154 = vadd.f32 %v1965, %v2153
        %v2155 = vpop.f32.mrf.mxu0
        %v2156 = vadd.f32 %v1967, %v2155
        %2157 = vmatmul.bf16.gmra.mxu0 %v1167
        %v2158 = vpop.f32.mrf.mxu0
        %v2159 = vadd.f32 %v1970, %v2158
        %v2160 = vpop.f32.mrf.mxu0
        %v2161 = vadd.f32 %v1972, %v2160
        %2162 = vmatmul.bf16.gmra.mxu0 %v1168
        %v2163 = vpop.f32.mrf.mxu0
        %v2164 = vadd.f32 %v1975, %v2163
        %v2165 = vpop.f32.mrf.mxu0
        %v2166 = vadd.f32 %v1977, %v2165
        %2167 = vmatmul.bf16.gmra.mxu0 %v1169
        %v2168 = vpop.f32.mrf.mxu0
        %v2169 = vadd.f32 %v1980, %v2168
        %v2170 = vpop.f32.mrf.mxu0
        %v2171 = vadd.f32 %v1982, %v2170
        %2172 = vmatmul.bf16.gmra.mxu0 %v1170
        %v2173 = vpop.f32.mrf.mxu0
        %v2174 = vadd.f32 %v1985, %v2173
        %v2175 = vpop.f32.mrf.mxu0
        %v2176 = vadd.f32 %v1987, %v2175
        %2177 = vmatmul.bf16.gmra.mxu0 %v1171
        %v2178 = vpop.f32.mrf.mxu0
        %v2179 = vadd.f32 %v1990, %v2178
        %v2180 = vpop.f32.mrf.mxu0
        %v2181 = vadd.f32 %v1992, %v2180
        %2182 = vmatmul.bf16.gmra.mxu0 %v1172
        %v2183 = vpop.f32.mrf.mxu0
        %v2184 = vadd.f32 %v1995, %v2183
        %v2185 = vpop.f32.mrf.mxu0
        %v2186 = vadd.f32 %v1997, %v2185
        %2187 = vmatmul.bf16.gmra.mxu0 %v1173
        %v2188 = vpop.f32.mrf.mxu0
        %v2189 = vadd.f32 %v2000, %v2188
        %v2190 = vpop.f32.mrf.mxu0
        %v2191 = vadd.f32 %v2002, %v2190
        %2192 = vmatmul.bf16.gmra.mxu0 %v1174
        %v2193 = vpop.f32.mrf.mxu0
        %v2194 = vadd.f32 %v2005, %v2193
        %v2195 = vpop.f32.mrf.mxu0
        %v2196 = vadd.f32 %v2007, %v2195
        %2197 = vmatmul.bf16.gmra.mxu0 %v1175
        %v2198 = vpop.f32.mrf.mxu0
        %v2199 = vadd.f32 %v2010, %v2198
        %v2200 = vpop.f32.mrf.mxu0
        %v2201 = vadd.f32 %v2012, %v2200
        %2202 = vmatmul.bf16.gmra.mxu0 %v1176
        %v2203 = vpop.f32.mrf.mxu0
        %v2204 = vadd.f32 %v2015, %v2203
        %v2205 = vpop.f32.mrf.mxu0
        %v2206 = vadd.f32 %v2017, %v2205
        %2207 = vmatmul.bf16.gmra.mxu0 %v1177
        %v2208 = vpop.f32.mrf.mxu0
        %v2209 = vadd.f32 %v2020, %v2208
        %v2210 = vpop.f32.mrf.mxu0
        %v2211 = vadd.f32 %v2022, %v2210
        %2212 = vmatmul.bf16.gmra.mxu0 %v1178
        %v2213 = vpop.f32.mrf.mxu0
        %v2214 = vadd.f32 %v2025, %v2213
        %v2215 = vpop.f32.mrf.mxu0
        %v2216 = vadd.f32 %v2027, %v2215
        %2217 = vmatmul.bf16.gmra.mxu0 %v1179
        %v2218 = vpop.f32.mrf.mxu0
        %v2219 = vadd.f32 %v2030, %v2218
        %v2220 = vpop.f32.mrf.mxu0
        %v2221 = vadd.f32 %v2032, %v2220
        %2222 = vmatmul.bf16.gmra.mxu0 %v1180
        %v2223 = vpop.f32.mrf.mxu0
        %v2224 = vadd.f32 %v2035, %v2223
        %v2225 = vpop.f32.mrf.mxu0
        %v2226 = vadd.f32 %v2037, %v2225
        %2227 = vmatmul.bf16.gmra.mxu0 %v1181
        %v2228 = vpop.f32.mrf.mxu0
        %v2229 = vadd.f32 %v2040, %v2228
        %v2230 = vpop.f32.mrf.mxu0
        %v2231 = vadd.f32 %v2042, %v2230
        %2232 = vmatmul.bf16.gmra.mxu0 %v1182
        %v2233 = vpop.f32.mrf.mxu0
        %v2234 = vadd.f32 %v2045, %v2233
        %v2235 = vpop.f32.mrf.mxu0
        %v2236 = vadd.f32 %v2047, %v2235
        %2237 = vmatmul.bf16.gmra.mxu0 %v1183
        %v2238 = vpop.f32.mrf.mxu0
        %v2239 = vadd.f32 %v2050, %v2238
        %v2240 = vpop.f32.mrf.mxu0
        %v2241 = vadd.f32 %v2052, %v2240
        %2242 = vmatmul.bf16.gmra.mxu0 %v1184
        %v2243 = vpop.f32.mrf.mxu0
        %v2244 = vadd.f32 %v2055, %v2243
        %v2245 = vpop.f32.mrf.mxu0
        %v2246 = vadd.f32 %v2057, %v2245
        %2247 = vmatmul.bf16.gmra.mxu0 %v1185
        %v2248 = vpop.f32.mrf.mxu0
        %v2249 = vadd.f32 %v2060, %v2248
        %v2250 = vpop.f32.mrf.mxu0
        %v2251 = vadd.f32 %v2062, %v2250
        %2252 = vmatmul.bf16.gmra.mxu0 %v1186
        %v2253 = vpop.f32.mrf.mxu0
        %v2254 = vadd.f32 %v2065, %v2253
        %v2255 = vpop.f32.mrf.mxu0
        %v2256 = vadd.f32 %v2067, %v2255
        %2257 = vmatmul.bf16.gmra.mxu0 %v1187
        %v2258 = vpop.f32.mrf.mxu0
        %v2259 = vadd.f32 %v2070, %v2258
        %v2260 = vpop.f32.mrf.mxu0
        %v2261 = vadd.f32 %v2072, %v2260
        %2262 = vdwg.mxu0
        %2263 = vmatpush.bf16.msra.mxu0 %v1663
        %2264 = vmatpush.bf16.msra.mxu0 %v1662
        %2265 = vmatpush.bf16.msra.mxu0 %v1661
        %2266 = vmatpush.bf16.msra.mxu0 %v1660
        %2267 = vmatpush.bf16.msra.mxu0 %v1659
        %2268 = vmatpush.bf16.msra.mxu0 %v1658
        %2269 = vmatpush.bf16.msra.mxu0 %v1657
        %2270 = vmatpush.bf16.msra.mxu0 %v1656
        %2271 = vmatmul.bf16.gmra.mxu0 %v1368
        %v2272 = vpop.f32.mrf.mxu0
        %v2273 = vadd.f32 %v2084, %v2272
        %v2274 = vpop.f32.mrf.mxu0
        %v2275 = vadd.f32 %v2086, %v2274
        %2276 = vmatmul.bf16.gmra.mxu0 %v1369
        %v2277 = vpop.f32.mrf.mxu0
        %v2278 = vadd.f32 %v2089, %v2277
        %v2279 = vpop.f32.mrf.mxu0
        %v2280 = vadd.f32 %v2091, %v2279
        %2281 = vmatmul.bf16.gmra.mxu0 %v1370
        %v2282 = vpop.f32.mrf.mxu0
        %v2283 = vadd.f32 %v2094, %v2282
        %v2284 = vpop.f32.mrf.mxu0
        %v2285 = vadd.f32 %v2096, %v2284
        %2286 = vmatmul.bf16.gmra.mxu0 %v1371
        %v2287 = vpop.f32.mrf.mxu0
        %v2288 = vadd.f32 %v2099, %v2287
        %v2289 = vpop.f32.mrf.mxu0
        %v2290 = vadd.f32 %v2101, %v2289
        %2291 = vmatmul.bf16.gmra.mxu0 %v1372
        %v2292 = vpop.f32.mrf.mxu0
        %v2293 = vadd.f32 %v2104, %v2292
        %v2294 = vpop.f32.mrf.mxu0
        %v2295 = vadd.f32 %v2106, %v2294
        %2296 = vmatmul.bf16.gmra.mxu0 %v1373
        %v2297 = vpop.f32.mrf.mxu0
        %v2298 = vadd.f32 %v2109, %v2297
        %v2299 = vpop.f32.mrf.mxu0
        %v2300 = vadd.f32 %v2111, %v2299
        %2301 = vmatmul.bf16.gmra.mxu0 %v1374
        %v2302 = vpop.f32.mrf.mxu0
        %v2303 = vadd.f32 %v2114, %v2302
        %v2304 = vpop.f32.mrf.mxu0
        %v2305 = vadd.f32 %v2116, %v2304
        %2306 = vmatmul.bf16.gmra.mxu0 %v1375
        %v2307 = vpop.f32.mrf.mxu0
        %v2308 = vadd.f32 %v2119, %v2307
        %v2309 = vpop.f32.mrf.mxu0
        %v2310 = vadd.f32 %v2121, %v2309
        %2311 = vmatmul.bf16.gmra.mxu0 %v1376
        %v2312 = vpop.f32.mrf.mxu0
        %v2313 = vadd.f32 %v2124, %v2312
        %v2314 = vpop.f32.mrf.mxu0
        %v2315 = vadd.f32 %v2126, %v2314
        %2316 = vmatmul.bf16.gmra.mxu0 %v1377
        %v2317 = vpop.f32.mrf.mxu0
        %v2318 = vadd.f32 %v2129, %v2317
        %v2319 = vpop.f32.mrf.mxu0
        %v2320 = vadd.f32 %v2131, %v2319
        %2321 = vmatmul.bf16.gmra.mxu0 %v1378
        %v2322 = vpop.f32.mrf.mxu0
        %v2323 = vadd.f32 %v2134, %v2322
        %v2324 = vpop.f32.mrf.mxu0
        %v2325 = vadd.f32 %v2136, %v2324
        %2326 = vmatmul.bf16.gmra.mxu0 %v1379
        %v2327 = vpop.f32.mrf.mxu0
        %v2328 = vadd.f32 %v2139, %v2327
        %v2329 = vpop.f32.mrf.mxu0
        %v2330 = vadd.f32 %v2141, %v2329
        %2331 = vmatmul.bf16.gmra.mxu0 %v1380
        %v2332 = vpop.f32.mrf.mxu0
        %v2333 = vadd.f32 %v2144, %v2332
        %v2334 = vpop.f32.mrf.mxu0
        %v2335 = vadd.f32 %v2146, %v2334
        %2336 = vmatmul.bf16.gmra.mxu0 %v1381
        %v2337 = vpop.f32.mrf.mxu0
        %v2338 = vadd.f32 %v2149, %v2337
        %v2339 = vpop.f32.mrf.mxu0
        %v2340 = vadd.f32 %v2151, %v2339
        %2341 = vmatmul.bf16.gmra.mxu0 %v1382
        %v2342 = vpop.f32.mrf.mxu0
        %v2343 = vadd.f32 %v2154, %v2342
        %v2344 = vpop.f32.mrf.mxu0
        %v2345 = vadd.f32 %v2156, %v2344
        %2346 = vmatmul.bf16.gmra.mxu0 %v1383
        %v2347 = vpop.f32.mrf.mxu0
        %v2348 = vadd.f32 %v2159, %v2347
        %v2349 = vpop.f32.mrf.mxu0
        %v2350 = vadd.f32 %v2161, %v2349
        %2351 = vmatmul.bf16.gmra.mxu0 %v1384
        %v2352 = vpop.f32.mrf.mxu0
        %v2353 = vadd.f32 %v2164, %v2352
        %v2354 = vpop.f32.mrf.mxu0
        %v2355 = vadd.f32 %v2166, %v2354
        %2356 = vmatmul.bf16.gmra.mxu0 %v1385
        %v2357 = vpop.f32.mrf.mxu0
        %v2358 = vadd.f32 %v2169, %v2357
        %v2359 = vpop.f32.mrf.mxu0
        %v2360 = vadd.f32 %v2171, %v2359
        %2361 = vmatmul.bf16.gmra.mxu0 %v1386
        %v2362 = vpop.f32.mrf.mxu0
        %v2363 = vadd.f32 %v2174, %v2362
        %v2364 = vpop.f32.mrf.mxu0
        %v2365 = vadd.f32 %v2176, %v2364
        %2366 = vmatmul.bf16.gmra.mxu0 %v1387
        %v2367 = vpop.f32.mrf.mxu0
        %v2368 = vadd.f32 %v2179, %v2367
        %v2369 = vpop.f32.mrf.mxu0
        %v2370 = vadd.f32 %v2181, %v2369
        %2371 = vmatmul.bf16.gmra.mxu0 %v1388
        %v2372 = vpop.f32.mrf.mxu0
        %v2373 = vadd.f32 %v2184, %v2372
        %v2374 = vpop.f32.mrf.mxu0
        %v2375 = vadd.f32 %v2186, %v2374
        %2376 = vmatmul.bf16.gmra.mxu0 %v1389
        %v2377 = vpop.f32.mrf.mxu0
        %v2378 = vadd.f32 %v2189, %v2377
        %v2379 = vpop.f32.mrf.mxu0
        %v2380 = vadd.f32 %v2191, %v2379
        %2381 = vmatmul.bf16.gmra.mxu0 %v1390
        %v2382 = vpop.f32.mrf.mxu0
        %v2383 = vadd.f32 %v2194, %v2382
        %v2384 = vpop.f32.mrf.mxu0
        %v2385 = vadd.f32 %v2196, %v2384
        %2386 = vmatmul.bf16.gmra.mxu0 %v1391
        %v2387 = vpop.f32.mrf.mxu0
        %v2388 = vadd.f32 %v2199, %v2387
        %v2389 = vpop.f32.mrf.mxu0
        %v2390 = vadd.f32 %v2201, %v2389
        %2391 = vmatmul.bf16.gmra.mxu0 %v1392
        %v2392 = vpop.f32.mrf.mxu0
        %v2393 = vadd.f32 %v2204, %v2392
        %v2394 = vpop.f32.mrf.mxu0
        %v2395 = vadd.f32 %v2206, %v2394
        %2396 = vmatmul.bf16.gmra.mxu0 %v1393
        %v2397 = vpop.f32.mrf.mxu0
        %v2398 = vadd.f32 %v2209, %v2397
        %v2399 = vpop.f32.mrf.mxu0
        %v2400 = vadd.f32 %v2211, %v2399
        %2401 = vmatmul.bf16.gmra.mxu0 %v1394
        %v2402 = vpop.f32.mrf.mxu0
        %v2403 = vadd.f32 %v2214, %v2402
        %v2404 = vpop.f32.mrf.mxu0
        %v2405 = vadd.f32 %v2216, %v2404
        %2406 = vmatmul.bf16.gmra.mxu0 %v1395
        %v2407 = vpop.f32.mrf.mxu0
        %v2408 = vadd.f32 %v2219, %v2407
        %v2409 = vpop.f32.mrf.mxu0
        %v2410 = vadd.f32 %v2221, %v2409
        %2411 = vmatmul.bf16.gmra.mxu0 %v1396
        %v2412 = vpop.f32.mrf.mxu0
        %v2413 = vadd.f32 %v2224, %v2412
        %v2414 = vpop.f32.mrf.mxu0
        %v2415 = vadd.f32 %v2226, %v2414
        %2416 = vmatmul.bf16.gmra.mxu0 %v1397
        %v2417 = vpop.f32.mrf.mxu0
        %v2418 = vadd.f32 %v2229, %v2417
        %v2419 = vpop.f32.mrf.mxu0
        %v2420 = vadd.f32 %v2231, %v2419
        %2421 = vmatmul.bf16.gmra.mxu0 %v1398
        %v2422 = vpop.f32.mrf.mxu0
        %v2423 = vadd.f32 %v2234, %v2422
        %v2424 = vpop.f32.mrf.mxu0
        %v2425 = vadd.f32 %v2236, %v2424
        %2426 = vmatmul.bf16.gmra.mxu0 %v1399
        %v2427 = vpop.f32.mrf.mxu0
        %v2428 = vadd.f32 %v2239, %v2427
        %v2429 = vpop.f32.mrf.mxu0
        %v2430 = vadd.f32 %v2241, %v2429
        %2431 = vmatmul.bf16.gmra.mxu0 %v1400
        %v2432 = vpop.f32.mrf.mxu0
        %v2433 = vadd.f32 %v2244, %v2432
        %v2434 = vpop.f32.mrf.mxu0
        %v2435 = vadd.f32 %v2246, %v2434
        %2436 = vmatmul.bf16.gmra.mxu0 %v1401
        %v2437 = vpop.f32.mrf.mxu0
        %v2438 = vadd.f32 %v2249, %v2437
        %v2439 = vpop.f32.mrf.mxu0
        %v2440 = vadd.f32 %v2251, %v2439
        %2441 = vmatmul.bf16.gmra.mxu0 %v1402
        %v2442 = vpop.f32.mrf.mxu0
        %v2443 = vadd.f32 %v2254, %v2442
        %v2444 = vpop.f32.mrf.mxu0
        %v2445 = vadd.f32 %v2256, %v2444
        %2446 = vmatmul.bf16.gmra.mxu0 %v1403
        %v2447 = vpop.f32.mrf.mxu0
        %v2448 = vadd.f32 %v2259, %v2447
        %v2449 = vpop.f32.mrf.mxu0
        %v2450 = vadd.f32 %v2261, %v2449
        %2451 = vdwg.mxu0
        %v2452 = vpack.c.bf16 %v2273, %v2273
        %v2453 = vpack.c.bf16 %v2275, %v2275
        %v2454 = vpack.c.bf16 %v2278, %v2278
        %v2455 = vpack.c.bf16 %v2280, %v2280
        %v2456 = vpack.c.bf16 %v2283, %v2283
        %v2457 = vpack.c.bf16 %v2285, %v2285
        %v2458 = vpack.c.bf16 %v2288, %v2288
        %v2459 = vpack.c.bf16 %v2290, %v2290
        %v2460 = vpack.c.bf16 %v2293, %v2293
        %v2461 = vpack.c.bf16 %v2295, %v2295
        %v2462 = vpack.c.bf16 %v2298, %v2298
        %v2463 = vpack.c.bf16 %v2300, %v2300
        %v2464 = vpack.c.bf16 %v2303, %v2303
        %v2465 = vpack.c.bf16 %v2305, %v2305
        %v2466 = vpack.c.bf16 %v2308, %v2308
        %v2467 = vpack.c.bf16 %v2310, %v2310
        %v2468 = vpack.c.bf16 %v2313, %v2313
        %v2469 = vpack.c.bf16 %v2315, %v2315
        %v2470 = vpack.c.bf16 %v2318, %v2318
        %v2471 = vpack.c.bf16 %v2320, %v2320
        %v2472 = vpack.c.bf16 %v2323, %v2323
        %v2473 = vpack.c.bf16 %v2325, %v2325
        %v2474 = vpack.c.bf16 %v2328, %v2328
        %v2475 = vpack.c.bf16 %v2330, %v2330
        %v2476 = vpack.c.bf16 %v2333, %v2333
        %v2477 = vpack.c.bf16 %v2335, %v2335
        %v2478 = vpack.c.bf16 %v2338, %v2338
        %v2479 = vpack.c.bf16 %v2340, %v2340
        %v2480 = vpack.c.bf16 %v2343, %v2343
        %v2481 = vpack.c.bf16 %v2345, %v2345
        %v2482 = vpack.c.bf16 %v2348, %v2348
        %v2483 = vpack.c.bf16 %v2350, %v2350
        %v2484 = vpack.c.bf16 %v2353, %v2353
        %v2485 = vpack.c.bf16 %v2355, %v2355
        %v2486 = vpack.c.bf16 %v2358, %v2358
        %v2487 = vpack.c.bf16 %v2360, %v2360
        %v2488 = vpack.c.bf16 %v2363, %v2363
        %v2489 = vpack.c.bf16 %v2365, %v2365
        %v2490 = vpack.c.bf16 %v2368, %v2368
        %v2491 = vpack.c.bf16 %v2370, %v2370
        %v2492 = vpack.c.bf16 %v2373, %v2373
        %v2493 = vpack.c.bf16 %v2375, %v2375
        %v2494 = vpack.c.bf16 %v2378, %v2378
        %v2495 = vpack.c.bf16 %v2380, %v2380
        %v2496 = vpack.c.bf16 %v2383, %v2383
        %v2497 = vpack.c.bf16 %v2385, %v2385
        %v2498 = vpack.c.bf16 %v2388, %v2388
        %v2499 = vpack.c.bf16 %v2390, %v2390
        %v2500 = vpack.c.bf16 %v2393, %v2393
        %v2501 = vpack.c.bf16 %v2395, %v2395
        %v2502 = vpack.c.bf16 %v2398, %v2398
        %v2503 = vpack.c.bf16 %v2400, %v2400
        %v2504 = vpack.c.bf16 %v2403, %v2403
        %v2505 = vpack.c.bf16 %v2405, %v2405
        %v2506 = vpack.c.bf16 %v2408, %v2408
        %v2507 = vpack.c.bf16 %v2410, %v2410
        %v2508 = vpack.c.bf16 %v2413, %v2413
        %v2509 = vpack.c.bf16 %v2415, %v2415
        %v2510 = vpack.c.bf16 %v2418, %v2418
        %v2511 = vpack.c.bf16 %v2420, %v2420
        %v2512 = vpack.c.bf16 %v2423, %v2423
        %v2513 = vpack.c.bf16 %v2425, %v2425
        %v2514 = vpack.c.bf16 %v2428, %v2428
        %v2515 = vpack.c.bf16 %v2430, %v2430
        %v2516 = vpack.c.bf16 %v2433, %v2433
        %v2517 = vpack.c.bf16 %v2435, %v2435
        %v2518 = vpack.c.bf16 %v2438, %v2438
        %v2519 = vpack.c.bf16 %v2440, %v2440
        %v2520 = vpack.c.bf16 %v2443, %v2443
        %v2521 = vpack.c.bf16 %v2445, %v2445
        %v2522 = vpack.c.bf16 %v2448, %v2448
        %v2523 = vpack.c.bf16 %v2450, %v2450
        %2524 = vst [vmem:[%s252] sm:$0xf] %v2452
        %2525 = vst [vmem:[%s252 + $0x4] sm:$0xf] %v2453
        %2526 = vst [vmem:[%s252 + $0x8] sm:$0xf] %v2454
        %2527 = vst [vmem:[%s252 + $0xc] sm:$0xf] %v2455
        %2528 = vst [vmem:[%s252 + $0x10] sm:$0xf] %v2456
        %2529 = vst [vmem:[%s252 + $0x14] sm:$0xf] %v2457
        %2530 = vst [vmem:[%s252 + $0x18] sm:$0xf] %v2458
        %2531 = vst [vmem:[%s252 + $0x1c] sm:$0xf] %v2459
        %2532 = vst [vmem:[%s252 + $0x20] sm:$0xf] %v2460
        %2533 = vst [vmem:[%s252 + $0x24] sm:$0xf] %v2461
        %2534 = vst [vmem:[%s252 + $0x28] sm:$0xf] %v2462
        %2535 = vst [vmem:[%s252 + $0x2c] sm:$0xf] %v2463
        %2536 = vst [vmem:[%s252 + $0x30] sm:$0xf] %v2464
        %2537 = vst [vmem:[%s252 + $0x34] sm:$0xf] %v2465
        %2538 = vst [vmem:[%s252 + $0x38] sm:$0xf] %v2466
        %2539 = vst [vmem:[%s252 + $0x3c] sm:$0xf] %v2467
        %2540 = vst [vmem:[%s252 + $0x40] sm:$0xf] %v2468
        %2541 = vst [vmem:[%s252 + $0x44] sm:$0xf] %v2469
        %2542 = vst [vmem:[%s252 + $0x48] sm:$0xf] %v2470
        %2543 = vst [vmem:[%s252 + $0x4c] sm:$0xf] %v2471
        %2544 = vst [vmem:[%s252 + $0x50] sm:$0xf] %v2472
        %2545 = vst [vmem:[%s252 + $0x54] sm:$0xf] %v2473
        %2546 = vst [vmem:[%s252 + $0x58] sm:$0xf] %v2474
        %2547 = vst [vmem:[%s252 + $0x5c] sm:$0xf] %v2475
        %2548 = vst [vmem:[%s252 + $0x60] sm:$0xf] %v2476
        %2549 = vst [vmem:[%s252 + $0x64] sm:$0xf] %v2477
        %2550 = vst [vmem:[%s252 + $0x68] sm:$0xf] %v2478
        %2551 = vst [vmem:[%s252 + $0x6c] sm:$0xf] %v2479
        %2552 = vst [vmem:[%s252 + $0x70] sm:$0xf] %v2480
        %2553 = vst [vmem:[%s252 + $0x74] sm:$0xf] %v2481
        %2554 = vst [vmem:[%s252 + $0x78] sm:$0xf] %v2482
        %2555 = vst [vmem:[%s252 + $0x7c] sm:$0xf] %v2483
        %2556 = vst [vmem:[%s252 + $0x80] sm:$0xf] %v2484
        %2557 = vst [vmem:[%s252 + $0x84] sm:$0xf] %v2485
        %2558 = vst [vmem:[%s252 + $0x88] sm:$0xf] %v2486
        %2559 = vst [vmem:[%s252 + $0x8c] sm:$0xf] %v2487
        %2560 = vst [vmem:[%s252 + $0x90] sm:$0xf] %v2488
        %2561 = vst [vmem:[%s252 + $0x94] sm:$0xf] %v2489
        %2562 = vst [vmem:[%s252 + $0x98] sm:$0xf] %v2490
        %2563 = vst [vmem:[%s252 + $0x9c] sm:$0xf] %v2491
        %2564 = vst [vmem:[%s252 + $0xa0] sm:$0xf] %v2492
        %2565 = vst [vmem:[%s252 + $0xa4] sm:$0xf] %v2493
        %2566 = vst [vmem:[%s252 + $0xa8] sm:$0xf] %v2494
        %2567 = vst [vmem:[%s252 + $0xac] sm:$0xf] %v2495
        %2568 = vst [vmem:[%s252 + $0xb0] sm:$0xf] %v2496
        %2569 = vst [vmem:[%s252 + $0xb4] sm:$0xf] %v2497
        %2570 = vst [vmem:[%s252 + $0xb8] sm:$0xf] %v2498
        %2571 = vst [vmem:[%s252 + $0xbc] sm:$0xf] %v2499
        %2572 = vst [vmem:[%s252 + $0xc0] sm:$0xf] %v2500
        %2573 = vst [vmem:[%s252 + $0xc4] sm:$0xf] %v2501
        %2574 = vst [vmem:[%s252 + $0xc8] sm:$0xf] %v2502
        %2575 = vst [vmem:[%s252 + $0xcc] sm:$0xf] %v2503
        %2576 = vst [vmem:[%s252 + $0xd0] sm:$0xf] %v2504
        %2577 = vst [vmem:[%s252 + $0xd4] sm:$0xf] %v2505
        %2578 = vst [vmem:[%s252 + $0xd8] sm:$0xf] %v2506
        %2579 = vst [vmem:[%s252 + $0xdc] sm:$0xf] %v2507
        %2580 = vst [vmem:[%s252 + $0xe0] sm:$0xf] %v2508
        %2581 = vst [vmem:[%s252 + $0xe4] sm:$0xf] %v2509
        %2582 = vst [vmem:[%s252 + $0xe8] sm:$0xf] %v2510
        %2583 = vst [vmem:[%s252 + $0xec] sm:$0xf] %v2511
        %2584 = vst [vmem:[%s252 + $0xf0] sm:$0xf] %v2512
        %2585 = vst [vmem:[%s252 + $0xf4] sm:$0xf] %v2513
        %2586 = vst [vmem:[%s252 + $0xf8] sm:$0xf] %v2514
        %2587 = vst [vmem:[%s252 + $0xfc] sm:$0xf] %v2515
        %2588 = vst [vmem:[%s252 + $0x100] sm:$0xf] %v2516
        %2589 = vst [vmem:[%s252 + $0x104] sm:$0xf] %v2517
        %2590 = vst [vmem:[%s252 + $0x108] sm:$0xf] %v2518
        %2591 = vst [vmem:[%s252 + $0x10c] sm:$0xf] %v2519
        %2592 = vst [vmem:[%s252 + $0x110] sm:$0xf] %v2520
        %2593 = vst [vmem:[%s252 + $0x114] sm:$0xf] %v2521
        %2594 = vst [vmem:[%s252 + $0x118] sm:$0xf] %v2522
        %2595 = vst [vmem:[%s252 + $0x11c] sm:$0xf] %v2523
        %v2596 = vld [vmem:[#allocation2] sm:$0x1]
        %v2597 = vadd.f32 %v2273, %v2275
        %v2598 = vadd.f32 %v2597, %v2278
        %v2599 = vadd.f32 %v2598, %v2280
        %v2600 = vadd.f32 %v2599, %v2283
        %v2601 = vadd.f32 %v2600, %v2285
        %v2602 = vadd.f32 %v2601, %v2288
        %v2603 = vadd.f32 %v2602, %v2290
        %v2604 = vadd.f32 %v2603, %v2293
        %v2605 = vadd.f32 %v2604, %v2295
        %v2606 = vadd.f32 %v2605, %v2298
        %v2607 = vadd.f32 %v2606, %v2300
        %v2608 = vadd.f32 %v2607, %v2303
        %v2609 = vadd.f32 %v2608, %v2305
        %v2610 = vadd.f32 %v2609, %v2308
        %v2611 = vadd.f32 %v2610, %v2310
        %v2612 = vadd.f32 %v2611, %v2313
        %v2613 = vadd.f32 %v2612, %v2315
        %v2614 = vadd.f32 %v2613, %v2318
        %v2615 = vadd.f32 %v2614, %v2320
        %v2616 = vadd.f32 %v2615, %v2323
        %v2617 = vadd.f32 %v2616, %v2325
        %v2618 = vadd.f32 %v2617, %v2328
        %v2619 = vadd.f32 %v2618, %v2330
        %v2620 = vadd.f32 %v2619, %v2333
        %v2621 = vadd.f32 %v2620, %v2335
        %v2622 = vadd.f32 %v2621, %v2338
        %v2623 = vadd.f32 %v2622, %v2340
        %v2624 = vadd.f32 %v2623, %v2343
        %v2625 = vadd.f32 %v2624, %v2345
        %v2626 = vadd.f32 %v2625, %v2348
        %v2627 = vadd.f32 %v2626, %v2350
        %v2628 = vadd.f32 %v2627, %v2353
        %v2629 = vadd.f32 %v2628, %v2355
        %v2630 = vadd.f32 %v2629, %v2358
        %v2631 = vadd.f32 %v2630, %v2360
        %v2632 = vadd.f32 %v2631, %v2363
        %v2633 = vadd.f32 %v2632, %v2365
        %v2634 = vadd.f32 %v2633, %v2368
        %v2635 = vadd.f32 %v2634, %v2370
        %v2636 = vadd.f32 %v2635, %v2373
        %v2637 = vadd.f32 %v2636, %v2375
        %v2638 = vadd.f32 %v2637, %v2378
        %v2639 = vadd.f32 %v2638, %v2380
        %v2640 = vadd.f32 %v2639, %v2383
        %v2641 = vadd.f32 %v2640, %v2385
        %v2642 = vadd.f32 %v2641, %v2388
        %v2643 = vadd.f32 %v2642, %v2390
        %v2644 = vadd.f32 %v2643, %v2393
        %v2645 = vadd.f32 %v2644, %v2395
        %v2646 = vadd.f32 %v2645, %v2398
        %v2647 = vadd.f32 %v2646, %v2400
        %v2648 = vadd.f32 %v2647, %v2403
        %v2649 = vadd.f32 %v2648, %v2405
        %v2650 = vadd.f32 %v2649, %v2408
        %v2651 = vadd.f32 %v2650, %v2410
        %v2652 = vadd.f32 %v2651, %v2413
        %v2653 = vadd.f32 %v2652, %v2415
        %v2654 = vadd.f32 %v2653, %v2418
        %v2655 = vadd.f32 %v2654, %v2420
        %v2656 = vadd.f32 %v2655, %v2423
        %v2657 = vadd.f32 %v2656, %v2425
        %v2658 = vadd.f32 %v2657, %v2428
        %v2659 = vadd.f32 %v2658, %v2430
        %v2660 = vadd.f32 %v2659, %v2433
        %v2661 = vadd.f32 %v2660, %v2435
        %v2662 = vadd.f32 %v2661, %v2438
        %v2663 = vadd.f32 %v2662, %v2440
        %v2664 = vadd.f32 %v2663, %v2443
        %v2665 = vadd.f32 %v2664, %v2445
        %v2666 = vadd.f32 %v2665, %v2448
        %v2667 = vadd.f32 %v2666, %v2450
        %v2668 = vrot.slane %v2667, 4
        %v2669 = vadd.f32 %v2667, %v2668
        %v2670 = vrot.slane %v2669, 2
        %v2671 = vadd.f32 %v2669, %v2670
        %v2672 = vrot.slane %v2671, 1
        %v2673 = vadd.f32 %v2671, %v2672
        %v2674 = vadd.f32 %v2596, %v2673
        %2675 = vst [vmem:[#allocation2] sm:$0x1] %v2674
        %v2676 = vld [vmem:[#allocation3] sm:$0x1]
        %v2677 = vmul.f32 %v2273, %v2273
        %v2678 = vmul.f32 %v2275, %v2275
        %v2679 = vmul.f32 %v2278, %v2278
        %v2680 = vmul.f32 %v2280, %v2280
        %v2681 = vmul.f32 %v2283, %v2283
        %v2682 = vmul.f32 %v2285, %v2285
        %v2683 = vmul.f32 %v2288, %v2288
        %v2684 = vmul.f32 %v2290, %v2290
        %v2685 = vmul.f32 %v2293, %v2293
        %v2686 = vmul.f32 %v2295, %v2295
        %v2687 = vmul.f32 %v2298, %v2298
        %v2688 = vmul.f32 %v2300, %v2300
        %v2689 = vmul.f32 %v2303, %v2303
        %v2690 = vmul.f32 %v2305, %v2305
        %v2691 = vmul.f32 %v2308, %v2308
        %v2692 = vmul.f32 %v2310, %v2310
        %v2693 = vmul.f32 %v2313, %v2313
        %v2694 = vmul.f32 %v2315, %v2315
        %v2695 = vmul.f32 %v2318, %v2318
        %v2696 = vmul.f32 %v2320, %v2320
        %v2697 = vmul.f32 %v2323, %v2323
        %v2698 = vmul.f32 %v2325, %v2325
        %v2699 = vmul.f32 %v2328, %v2328
        %v2700 = vmul.f32 %v2330, %v2330
        %v2701 = vmul.f32 %v2333, %v2333
        %v2702 = vmul.f32 %v2335, %v2335
        %v2703 = vmul.f32 %v2338, %v2338
        %v2704 = vmul.f32 %v2340, %v2340
        %v2705 = vmul.f32 %v2343, %v2343
        %v2706 = vmul.f32 %v2345, %v2345
        %v2707 = vmul.f32 %v2348, %v2348
        %v2708 = vmul.f32 %v2350, %v2350
        %v2709 = vmul.f32 %v2353, %v2353
        %v2710 = vmul.f32 %v2355, %v2355
        %v2711 = vmul.f32 %v2358, %v2358
        %v2712 = vmul.f32 %v2360, %v2360
        %v2713 = vmul.f32 %v2363, %v2363
        %v2714 = vmul.f32 %v2365, %v2365
        %v2715 = vmul.f32 %v2368, %v2368
        %v2716 = vmul.f32 %v2370, %v2370
        %v2717 = vmul.f32 %v2373, %v2373
        %v2718 = vmul.f32 %v2375, %v2375
        %v2719 = vmul.f32 %v2378, %v2378
        %v2720 = vmul.f32 %v2380, %v2380
        %v2721 = vmul.f32 %v2383, %v2383
        %v2722 = vmul.f32 %v2385, %v2385
        %v2723 = vmul.f32 %v2388, %v2388
        %v2724 = vmul.f32 %v2390, %v2390
        %v2725 = vmul.f32 %v2393, %v2393
        %v2726 = vmul.f32 %v2395, %v2395
        %v2727 = vmul.f32 %v2398, %v2398
        %v2728 = vmul.f32 %v2400, %v2400
        %v2729 = vmul.f32 %v2403, %v2403
        %v2730 = vmul.f32 %v2405, %v2405
        %v2731 = vmul.f32 %v2408, %v2408
        %v2732 = vmul.f32 %v2410, %v2410
        %v2733 = vmul.f32 %v2413, %v2413
        %v2734 = vmul.f32 %v2415, %v2415
        %v2735 = vmul.f32 %v2418, %v2418
        %v2736 = vmul.f32 %v2420, %v2420
        %v2737 = vmul.f32 %v2423, %v2423
        %v2738 = vmul.f32 %v2425, %v2425
        %v2739 = vmul.f32 %v2428, %v2428
        %v2740 = vmul.f32 %v2430, %v2430
        %v2741 = vmul.f32 %v2433, %v2433
        %v2742 = vmul.f32 %v2435, %v2435
        %v2743 = vmul.f32 %v2438, %v2438
        %v2744 = vmul.f32 %v2440, %v2440
        %v2745 = vmul.f32 %v2443, %v2443
        %v2746 = vmul.f32 %v2445, %v2445
        %v2747 = vmul.f32 %v2448, %v2448
        %v2748 = vmul.f32 %v2450, %v2450
        %v2749 = vadd.f32 %v2677, %v2678
        %v2750 = vadd.f32 %v2749, %v2679
        %v2751 = vadd.f32 %v2750, %v2680
        %v2752 = vadd.f32 %v2751, %v2681
        %v2753 = vadd.f32 %v2752, %v2682
        %v2754 = vadd.f32 %v2753, %v2683
        %v2755 = vadd.f32 %v2754, %v2684
        %v2756 = vadd.f32 %v2755, %v2685
        %v2757 = vadd.f32 %v2756, %v2686
        %v2758 = vadd.f32 %v2757, %v2687
        %v2759 = vadd.f32 %v2758, %v2688
        %v2760 = vadd.f32 %v2759, %v2689
        %v2761 = vadd.f32 %v2760, %v2690
        %v2762 = vadd.f32 %v2761, %v2691
        %v2763 = vadd.f32 %v2762, %v2692
        %v2764 = vadd.f32 %v2763, %v2693
        %v2765 = vadd.f32 %v2764, %v2694
        %v2766 = vadd.f32 %v2765, %v2695
        %v2767 = vadd.f32 %v2766, %v2696
        %v2768 = vadd.f32 %v2767, %v2697
        %v2769 = vadd.f32 %v2768, %v2698
        %v2770 = vadd.f32 %v2769, %v2699
        %v2771 = vadd.f32 %v2770, %v2700
        %v2772 = vadd.f32 %v2771, %v2701
        %v2773 = vadd.f32 %v2772, %v2702
        %v2774 = vadd.f32 %v2773, %v2703
        %v2775 = vadd.f32 %v2774, %v2704
        %v2776 = vadd.f32 %v2775, %v2705
        %v2777 = vadd.f32 %v2776, %v2706
        %v2778 = vadd.f32 %v2777, %v2707
        %v2779 = vadd.f32 %v2778, %v2708
        %v2780 = vadd.f32 %v2779, %v2709
        %v2781 = vadd.f32 %v2780, %v2710
        %v2782 = vadd.f32 %v2781, %v2711
        %v2783 = vadd.f32 %v2782, %v2712
        %v2784 = vadd.f32 %v2783, %v2713
        %v2785 = vadd.f32 %v2784, %v2714
        %v2786 = vadd.f32 %v2785, %v2715
        %v2787 = vadd.f32 %v2786, %v2716
        %v2788 = vadd.f32 %v2787, %v2717
        %v2789 = vadd.f32 %v2788, %v2718
        %v2790 = vadd.f32 %v2789, %v2719
        %v2791 = vadd.f32 %v2790, %v2720
        %v2792 = vadd.f32 %v2791, %v2721
        %v2793 = vadd.f32 %v2792, %v2722
        %v2794 = vadd.f32 %v2793, %v2723
        %v2795 = vadd.f32 %v2794, %v2724
        %v2796 = vadd.f32 %v2795, %v2725
        %v2797 = vadd.f32 %v2796, %v2726
        %v2798 = vadd.f32 %v2797, %v2727
        %v2799 = vadd.f32 %v2798, %v2728
        %v2800 = vadd.f32 %v2799, %v2729
        %v2801 = vadd.f32 %v2800, %v2730
        %v2802 = vadd.f32 %v2801, %v2731
        %v2803 = vadd.f32 %v2802, %v2732
        %v2804 = vadd.f32 %v2803, %v2733
        %v2805 = vadd.f32 %v2804, %v2734
        %v2806 = vadd.f32 %v2805, %v2735
        %v2807 = vadd.f32 %v2806, %v2736
        %v2808 = vadd.f32 %v2807, %v2737
        %v2809 = vadd.f32 %v2808, %v2738
        %v2810 = vadd.f32 %v2809, %v2739
        %v2811 = vadd.f32 %v2810, %v2740
        %v2812 = vadd.f32 %v2811, %v2741
        %v2813 = vadd.f32 %v2812, %v2742
        %v2814 = vadd.f32 %v2813, %v2743
        %v2815 = vadd.f32 %v2814, %v2744
        %v2816 = vadd.f32 %v2815, %v2745
        %v2817 = vadd.f32 %v2816, %v2746
        %v2818 = vadd.f32 %v2817, %v2747
        %v2819 = vadd.f32 %v2818, %v2748
        %v2820 = vrot.slane %v2819, 4
        %v2821 = vadd.f32 %v2819, %v2820
        %v2822 = vrot.slane %v2821, 2
        %v2823 = vadd.f32 %v2821, %v2822
        %v2824 = vrot.slane %v2823, 1
        %v2825 = vadd.f32 %v2823, %v2824
        %v2826 = vadd.f32 %v2676, %v2825
        %2827 = vst [vmem:[#allocation3] sm:$0x1] %v2826
        // Predicated region
        $region41: #{tpu_custom_call.1} parent=27 // pred_check
          %p2828 = pneg %p266
        $region42: #{tpu_custom_call.1} parent=27 // pred_check_branch
          %2830 = sbr.rel (%p2828) target = $region44
        $region43: #{tpu_custom_call.1} parent=27 // pred_region
          %v2831 = vld [vmem:[#allocation2] sm:$0x1]
          %2832 = vst [vmem:[%s258] sm:$0x1] %v2831
          %v2833 = vld [vmem:[#allocation3] sm:$0x1]
          %2834 = vst [vmem:[%s264] sm:$0x1] %v2833
        $region44: #{tpu_custom_call.1} parent=27 // pred_fallthru
          _
        %s2835 = sand.u32 %s95, 1
        %s2836 = scalar_lea.sflag [#allocation6], %s2835
        %s2837 = sand.u32 %s95, 1
        %s2838 = smul.addr %s2837, 288
        %s2839 = scalar_lea.vmem [#allocation9], %s2838
        %s2840 = sand.u32 %s26, 1
        %s2841 = scalar_lea.sflag [#allocation11], %s2840
        %s2842 = sand.u32 %s121, 1
        %s2843 = scalar_lea.vmem [#allocation10], %s2842
        %s2844 = sand.u32 %s26, 1
        %s2845 = scalar_lea.sflag [#allocation11], %s2844
        %s2846 = sand.u32 %s147, 1
        %s2847 = scalar_lea.vmem [#allocation12], %s2846
        // Predicated region
        $region45: #{tpu_custom_call.1} parent=27 // pred_check
          %p2848 = pneg %p105
        $region46: #{tpu_custom_call.1} parent=27 // pred_check_branch
          %2850 = sbr.rel (%p2848) target = $region48
        $region47: #{tpu_custom_call.1} parent=27 // pred_region
          %s2851 = smul.u32 72, %s31
          %2853 = vsyncadd %s2836, 0
          %s2854 = smul.addr %s30, 72
          %s2855 = sadd.s32 %s2851, %s2854
          %s2856 = smul.addr %s2855, 4
          %s2857 = scalar_lea.hbm %s2, %s2856
          %s2858 = sshll.u32 %s2839, 4
          %s2859 = int_to_ptr.vmem [resolvable:$true] %s2858
          %s2860 = sshll.u32 %s2857, 4
          %s2861 = int_to_ptr.hbm [resolvable:$true] %s2860
          %2866 = dma.vmem_to_hbm [thread:$0]  %s2859, 4608, %s2861, %s2836, 64, 64, 4
        $region48: #{tpu_custom_call.1} parent=27 // pred_fallthru
          _
        // Predicated region
        $region49: #{tpu_custom_call.1} parent=27 // pred_check
          %p2867 = pneg %p131
        $region50: #{tpu_custom_call.1} parent=27 // pred_check_branch
          %2869 = sbr.rel (%p2867) target = $region52
        $region51: #{tpu_custom_call.1} parent=27 // pred_region
          %2871 = vsyncadd %s2841, 0
          %s2872 = scalar_lea.hbm %s3, %s30
          %s2874 = sshll.u32 %s2843, 4
          %s2875 = int_to_ptr.vmem [resolvable:$true] %s2874
          %s2876 = sshll.u32 %s2872, 4
          %s2877 = int_to_ptr.hbm [resolvable:$true] %s2876
          %2879 = dma.vmem_to_hbm [thread:$0]  %s2875, 16, %s2877, %s2841
        $region52: #{tpu_custom_call.1} parent=27 // pred_fallthru
          _
        // Predicated region
        $region53: #{tpu_custom_call.1} parent=27 // pred_check
          %p2880 = pneg %p157
        $region54: #{tpu_custom_call.1} parent=27 // pred_check_branch
          %2882 = sbr.rel (%p2880) target = $region56
        $region55: #{tpu_custom_call.1} parent=27 // pred_region
          %2884 = vsyncadd %s2845, 0
          %s2885 = scalar_lea.hbm %s4, %s30
          %s2887 = sshll.u32 %s2847, 4
          %s2888 = int_to_ptr.vmem [resolvable:$true] %s2887
          %s2889 = sshll.u32 %s2885, 4
          %s2890 = int_to_ptr.hbm [resolvable:$true] %s2889
          %2892 = dma.vmem_to_hbm [thread:$0]  %s2888, 16, %s2890, %s2845
        $region56: #{tpu_custom_call.1} parent=27 // pred_fallthru
          _
      $region28: #{tpu_custom_call.1} parent=5 // pred_fallthru
        _
      %p2893 = scmp.le.s32.totalorder 2, %s21
      // Predicated region
      $region57: #{tpu_custom_call.1} parent=5 // pred_check
        %p2894 = pneg %p2893
      $region58: #{tpu_custom_call.1} parent=5 // pred_check_branch
        %2896 = sbr.rel (%p2894) target = $region60
      $region59: #{tpu_custom_call.1} parent=5 // pred_region
        %s2897 = ssub.s32 %s21, 2
        // Predicated region
        $region61: #{tpu_custom_call.1} parent=59 // pred_check
          %p2898 = pneg %p111
        $region62: #{tpu_custom_call.1} parent=59 // pred_check_branch
          %2900 = sbr.rel (%p2898) target = $region64
        $region63: #{tpu_custom_call.1} parent=59 // pred_region
          %s2901 = sand.u32 %s96, 1
          %s2902 = scalar_lea.sflag [#allocation6], %s2901
          %s2903 = sand.u32 %s96, 1
          %s2904 = smul.addr %s2903, 288
          %s2905 = scalar_lea.vmem [#allocation9], %s2904
          %2907 = dma.done %s2902, 4608
        $region64: #{tpu_custom_call.1} parent=59 // pred_fallthru
          _
        // Predicated region
        $region65: #{tpu_custom_call.1} parent=59 // pred_check
          %p2908 = pneg %p137
        $region66: #{tpu_custom_call.1} parent=59 // pred_check_branch
          %2910 = sbr.rel (%p2908) target = $region68
        $region67: #{tpu_custom_call.1} parent=59 // pred_region
          %s2911 = sand.u32 %s27, 1
          %s2912 = scalar_lea.sflag [#allocation11], %s2911
          %s2913 = sand.u32 %s122, 1
          %s2914 = scalar_lea.vmem [#allocation10], %s2913
          %2916 = dma.done %s2912, 16
        $region68: #{tpu_custom_call.1} parent=59 // pred_fallthru
          _
        // Predicated region
        $region69: #{tpu_custom_call.1} parent=59 // pred_check
          %p2917 = pneg %p163
        $region70: #{tpu_custom_call.1} parent=59 // pred_check_branch
          %2919 = sbr.rel (%p2917) target = $region72
        $region71: #{tpu_custom_call.1} parent=59 // pred_region
          %s2920 = sand.u32 %s27, 1
          %s2921 = scalar_lea.sflag [#allocation11], %s2920
          %s2922 = sand.u32 %s148, 1
          %s2923 = scalar_lea.vmem [#allocation12], %s2922
          %2925 = dma.done %s2921, 16
        $region72: #{tpu_custom_call.1} parent=59 // pred_fallthru
          _
      $region60: #{tpu_custom_call.1} parent=5 // pred_fallthru
        _
    $region6: #{tpu_custom_call.1} parent=1 // loop_footer
      %s25 = sadd.s32 1, %s21
    $region7: #{tpu_custom_call.1} parent=1 // loop_footer_branch
      %20 = sbr.rel target = $region3
    $region8: #{tpu_custom_call.1} parent=1 // loop_exit
      _
    %2926 = vsyncpa [#allocation5], 1
    %s2927 = scalar_lea.sflag [#allocation5], 1
    %2928 = vsyncpa %s2927, 1
    %2929 = vsyncpa [#allocation8], 1
    %2930 = vsyncpa [#allocation6], 1
    %s2931 = scalar_lea.sflag [#allocation6], 1
    %2932 = vsyncpa %s2931, 1
    %2933 = vsyncpa [#allocation11], 1
    %s2934 = scalar_lea.sflag [#allocation11], 1
    %2935 = vsyncpa %s2934, 1

</llo_original>
